<compile_context>
chip_gen: v7x
topology: tpu7x:2x2x1
jax: 0.10.0
libtpu: 0.0.40
codegen_flags: <defaults>
</compile_context>

<pallas_src>
import jax
import jax.numpy as jnp
from jax.experimental import pallas as pl
from jax.experimental.pallas import tpu as pltpu


def _round_up(n: int, m: int) -> int:
    return ((n + m - 1) // m) * m


# ----------------------------------------------------------------------------
# Embedding table (matches DiffusionEmbedding._build_embedding exactly)
# ----------------------------------------------------------------------------
def build_embedding(num_steps: int, dim: int) -> jnp.ndarray:
    # dim corresponds to embedding_dim / 2 in the PyTorch module
    steps = jnp.arange(num_steps, dtype=jnp.float32)[:, None]                        # (T, 1)
    freqs = 10.0 ** (jnp.arange(dim, dtype=jnp.float32) / (dim - 1) * 4.0)[None, :]  # (1, dim)
    table = steps * freqs                                                            # (T, dim)
    return jnp.concatenate([jnp.sin(table), jnp.cos(table)], axis=1)                 # (T, 2*dim)


# ----------------------------------------------------------------------------
# One-time parameter prep (bf16 weight cast + bias merge hoisted out of the
# per-call path, per perf review).
# ----------------------------------------------------------------------------
def init_diffusion_embedding_params(key, num_steps, embedding_dim=128,
                                    projection_dim=None):
    if projection_dim is None:
        projection_dim = embedding_dim
    k1, k2, k3, k4 = jax.random.split(key, 4)
    # nn.Linear weights stored transposed as (in, out) so the kernel computes
    # (B, E) @ (E, P).
    w1 = jax.random.normal(k1, (embedding_dim, projection_dim), jnp.float32) * 0.05
    b1 = jax.random.normal(k2, (projection_dim,), jnp.float32) * 0.05
    w2 = jax.random.normal(k3, (projection_dim, projection_dim), jnp.float32) * 0.05
    b2 = jax.random.normal(k4, (projection_dim,), jnp.float32) * 0.05

    params = {
        "embedding": build_embedding(num_steps, embedding_dim // 2),   # (T, E) f32
        "w1_bf16": w1.astype(jnp.bfloat16),                            # cast ONCE
        "w2_bf16": w2.astype(jnp.bfloat16),
        "biases": jnp.stack([b1, b2], axis=0).astype(jnp.float32),     # (2, P) f32
        # f32 originals kept only for the reference check.
        "_w1_f32": w1, "_b1_f32": b1, "_w2_f32": w2, "_b2_f32": b2,
    }
    return params


# ----------------------------------------------------------------------------
# Fused Pallas kernel: SMEM-index row gather + Linear/SiLU + Linear/SiLU
# ----------------------------------------------------------------------------
def _diff_emb_kernel(step_ref, emb_ref, w1_ref, w2_ref, b_ref, o_ref, x_scratch):
    B_pad = x_scratch.shape[0]
    num_steps = emb_ref.shape[0]

    # --- gather: SMEM scalar indices -> dynamic row loads from the VMEM table.
    # Unrolled (B_pad is static). Indices clamped so OOB steps can't read
    # stale VMEM (PyTorch would raise; we clamp).
    for i in range(B_pad):
        idx = jnp.clip(step_ref[i], 0, num_steps - 1)
        x_scratch[pl.ds(i, 1), :] = emb_ref[pl.ds(idx, 1), :]
    x = x_scratch[...]                                                  # (B, E) f32

    b1 = b_ref[0:1, :]                                                  # (1, P) f32
    b2 = b_ref[1:2, :]                                                  # (1, P) f32

    # --- projection1 + SiLU (bf16 MXU inputs, f32 accumulation/activations) --
    h = jnp.dot(x.astype(w1_ref.dtype), w1_ref[...],
                preferred_element_type=jnp.float32) + b1                # (B, P) f32
    h = h * jax.nn.sigmoid(h)                                           # SiLU (f32)

    # --- projection2 + SiLU --------------------------------------------------
    y = jnp.dot(h.astype(w2_ref.dtype), w2_ref[...],
                preferred_element_type=jnp.float32) + b2                # (B, P) f32
    y = y * jax.nn.sigmoid(y)                                           # SiLU (f32)

    o_ref[...] = y.astype(o_ref.dtype)


def diffusion_embedding_forward(params, diffusion_step):
    """diffusion_step: (B,) int indices into the (num_steps, E) embedding table.

    Call once with as many steps as possible (ideally all num_steps) — the
    kernel is launch/DMA-latency bound, so batching is the big lever.
    """
    B = diffusion_step.shape[0]
    T, E = params["embedding"].shape
    P = params["w1_bf16"].shape[1]
    B_pad = _round_up(max(B, 8), 8)

    steps = jnp.pad(diffusion_step.astype(jnp.int32), (0, B_pad - B))   # (B_pad,)

    flops = 2 * B_pad * (E * P + P * P)
    bytes_accessed = (steps.size * 4 + params["embedding"].size * 4
                      + params["w1_bf16"].size * 2 + params["w2_bf16"].size * 2
                      + params["biases"].size * 4 + B_pad * P * 4)

    vmem = pl.BlockSpec(memory_space=pltpu.MemorySpace.VMEM)
    smem = pl.BlockSpec(memory_space=pltpu.MemorySpace.SMEM)

    out = pl.pallas_call(
        _diff_emb_kernel,
        out_shape=jax.ShapeDtypeStruct((B_pad, P), jnp.float32),
        in_specs=[smem, vmem, vmem, vmem, vmem],
        out_specs=vmem,
        scratch_shapes=[pltpu.VMEM((B_pad, E), jnp.float32)],
        cost_estimate=pl.CostEstimate(
            flops=flops,
            transcendentals=2 * B_pad * P,      # two sigmoids
            bytes_accessed=bytes_accessed),
    )(steps, params["embedding"], params["w1_bf16"], params["w2_bf16"],
      params["biases"])

    return out[:B]


# ----------------------------------------------------------------------------
# Reference (pure JAX) mirroring the kernel's bf16-weight / f32-accum math
# ----------------------------------------------------------------------------
def reference_forward(diffusion_step, embedding, w1, b1, w2, b2):
    x = embedding[diffusion_step]
    w1b = w1.astype(jnp.bfloat16)
    w2b = w2.astype(jnp.bfloat16)
    h = jnp.dot(x.astype(jnp.bfloat16), w1b, preferred_element_type=jnp.float32) + b1
    h = jax.nn.silu(h)
    y = jnp.dot(h.astype(jnp.bfloat16), w2b, preferred_element_type=jnp.float32) + b2
    return jax.nn.silu(y)


if __name__ == "__main__":
    num_steps = 50
    embedding_dim = 128
    projection_dim = 128

    key = jax.random.PRNGKey(0)
    params = init_diffusion_embedding_params(key, num_steps, embedding_dim,
                                             projection_dim)

    # Batch the ENTIRE sampling schedule in one call (per perf review): this
    # both amortizes launch/DMA cost and doubles as a precompute of the full
    # (num_steps, P) diffusion-embedding output table.
    diffusion_step = jnp.arange(num_steps, dtype=jnp.int32)

    out = diffusion_embedding_forward(params, diffusion_step)
    out = jax.block_until_ready(out)

    ref = reference_forward(diffusion_step, params["embedding"],
                            params["_w1_f32"], params["_b1_f32"],
                            params["_w2_f32"], params["_b2_f32"])

    assert out.shape == (num_steps, projection_dim)
    max_err = float(jnp.max(jnp.abs(out - ref)))
    assert jnp.allclose(out, ref, atol=2e-3, rtol=2e-3), max_err

    print("KERNEL_OK")
</pallas_src>

<mosaic_0001>
module attributes {stable_mosaic.version = 11 : i64} {
  func.func @_diff_emb_kernel(%arg0: memref<56xi32, #tpu.memory_space<smem>>, %arg1: memref<50x128xf32, #tpu.memory_space<vmem>>, %arg2: memref<128x128xbf16, #tpu.memory_space<vmem>>, %arg3: memref<128x128xbf16, #tpu.memory_space<vmem>>, %arg4: memref<2x128xf32, #tpu.memory_space<vmem>>, %arg5: memref<56x128xf32, #tpu.memory_space<vmem>>, %arg6: memref<56x128xf32, #tpu.memory_space<vmem>>) attributes {dimension_semantics = [], scalar_prefetch = 0 : i64, scratch_operands = 1 : i64, tpu.core_type = #tpu.core_type<tc>} {
    %c0 = arith.constant 0 : index
    %0 = memref.load %arg0[%c0] : memref<56xi32, #tpu.memory_space<smem>>
    %c0_i32 = arith.constant 0 : i32
    %c49_i32 = arith.constant 49 : i32
    %1 = arith.maxsi %c0_i32, %0 : i32
    %2 = arith.minsi %c49_i32, %1 : i32
    %3 = arith.index_cast %2 : i32 to index
    %c0_0 = arith.constant 0 : index
    %4 = vector.load %arg1[%3, %c0_0] : memref<50x128xf32, #tpu.memory_space<vmem>>, vector<1x128xf32>
    %c0_1 = arith.constant 0 : index
    %c0_2 = arith.constant 0 : index
    %5 = vector.load %arg6[%c0_1, %c0_2] : memref<56x128xf32, #tpu.memory_space<vmem>>, vector<1x128xf32>
    tpu.vector_store %arg6[%c0_1, %c0_2], %4 {strides = array<i32>} : memref<56x128xf32, #tpu.memory_space<vmem>>, vector<1x128xf32>,
    %c1 = arith.constant 1 : index
    %6 = memref.load %arg0[%c1] : memref<56xi32, #tpu.memory_space<smem>>
    %c0_i32_3 = arith.constant 0 : i32
    %c49_i32_4 = arith.constant 49 : i32
    %7 = arith.maxsi %c0_i32_3, %6 : i32
    %8 = arith.minsi %c49_i32_4, %7 : i32
    %9 = arith.index_cast %8 : i32 to index
    %c0_5 = arith.constant 0 : index
    %10 = vector.load %arg1[%9, %c0_5] : memref<50x128xf32, #tpu.memory_space<vmem>>, vector<1x128xf32>
    %c1_6 = arith.constant 1 : index
    %c0_7 = arith.constant 0 : index
    %11 = vector.load %arg6[%c1_6, %c0_7] : memref<56x128xf32, #tpu.memory_space<vmem>>, vector<1x128xf32>
    tpu.vector_store %arg6[%c1_6, %c0_7], %10 {strides = array<i32>} : memref<56x128xf32, #tpu.memory_space<vmem>>, vector<1x128xf32>,
    %c2 = arith.constant 2 : index
    %12 = memref.load %arg0[%c2] : memref<56xi32, #tpu.memory_space<smem>>
    %c0_i32_8 = arith.constant 0 : i32
    %c49_i32_9 = arith.constant 49 : i32
    %13 = arith.maxsi %c0_i32_8, %12 : i32
    %14 = arith.minsi %c49_i32_9, %13 : i32
    %15 = arith.index_cast %14 : i32 to index
    %c0_10 = arith.constant 0 : index
    %16 = vector.load %arg1[%15, %c0_10] : memref<50x128xf32, #tpu.memory_space<vmem>>, vector<1x128xf32>
    %c2_11 = arith.constant 2 : index
    %c0_12 = arith.constant 0 : index
    %17 = vector.load %arg6[%c2_11, %c0_12] : memref<56x128xf32, #tpu.memory_space<vmem>>, vector<1x128xf32>
    tpu.vector_store %arg6[%c2_11, %c0_12], %16 {strides = array<i32>} : memref<56x128xf32, #tpu.memory_space<vmem>>, vector<1x128xf32>,
    %c3 = arith.constant 3 : index
    %18 = memref.load %arg0[%c3] : memref<56xi32, #tpu.memory_space<smem>>
    %c0_i32_13 = arith.constant 0 : i32
    %c49_i32_14 = arith.constant 49 : i32
    %19 = arith.maxsi %c0_i32_13, %18 : i32
    %20 = arith.minsi %c49_i32_14, %19 : i32
    %21 = arith.index_cast %20 : i32 to index
    %c0_15 = arith.constant 0 : index
    %22 = vector.load %arg1[%21, %c0_15] : memref<50x128xf32, #tpu.memory_space<vmem>>, vector<1x128xf32>
    %c3_16 = arith.constant 3 : index
    %c0_17 = arith.constant 0 : index
    %23 = vector.load %arg6[%c3_16, %c0_17] : memref<56x128xf32, #tpu.memory_space<vmem>>, vector<1x128xf32>
    tpu.vector_store %arg6[%c3_16, %c0_17], %22 {strides = array<i32>} : memref<56x128xf32, #tpu.memory_space<vmem>>, vector<1x128xf32>,
    %c4 = arith.constant 4 : index
    %24 = memref.load %arg0[%c4] : memref<56xi32, #tpu.memory_space<smem>>
    %c0_i32_18 = arith.constant 0 : i32
    %c49_i32_19 = arith.constant 49 : i32
    %25 = arith.maxsi %c0_i32_18, %24 : i32
    %26 = arith.minsi %c49_i32_19, %25 : i32
    %27 = arith.index_cast %26 : i32 to index
    %c0_20 = arith.constant 0 : index
    %28 = vector.load %arg1[%27, %c0_20] : memref<50x128xf32, #tpu.memory_space<vmem>>, vector<1x128xf32>
    %c4_21 = arith.constant 4 : index
    %c0_22 = arith.constant 0 : index
    %29 = vector.load %arg6[%c4_21, %c0_22] : memref<56x128xf32, #tpu.memory_space<vmem>>, vector<1x128xf32>
    tpu.vector_store %arg6[%c4_21, %c0_22], %28 {strides = array<i32>} : memref<56x128xf32, #tpu.memory_space<vmem>>, vector<1x128xf32>,
    %c5 = arith.constant 5 : index
    %30 = memref.load %arg0[%c5] : memref<56xi32, #tpu.memory_space<smem>>
    %c0_i32_23 = arith.constant 0 : i32
    %c49_i32_24 = arith.constant 49 : i32
    %31 = arith.maxsi %c0_i32_23, %30 : i32
    %32 = arith.minsi %c49_i32_24, %31 : i32
    %33 = arith.index_cast %32 : i32 to index
    %c0_25 = arith.constant 0 : index
    %34 = vector.load %arg1[%33, %c0_25] : memref<50x128xf32, #tpu.memory_space<vmem>>, vector<1x128xf32>
    %c5_26 = arith.constant 5 : index
    %c0_27 = arith.constant 0 : index
    %35 = vector.load %arg6[%c5_26, %c0_27] : memref<56x128xf32, #tpu.memory_space<vmem>>, vector<1x128xf32>
    tpu.vector_store %arg6[%c5_26, %c0_27], %34 {strides = array<i32>} : memref<56x128xf32, #tpu.memory_space<vmem>>, vector<1x128xf32>,
    %c6 = arith.constant 6 : index
    %36 = memref.load %arg0[%c6] : memref<56xi32, #tpu.memory_space<smem>>
    %c0_i32_28 = arith.constant 0 : i32
    %c49_i32_29 = arith.constant 49 : i32
    %37 = arith.maxsi %c0_i32_28, %36 : i32
    %38 = arith.minsi %c49_i32_29, %37 : i32
    %39 = arith.index_cast %38 : i32 to index
    %c0_30 = arith.constant 0 : index
    %40 = vector.load %arg1[%39, %c0_30] : memref<50x128xf32, #tpu.memory_space<vmem>>, vector<1x128xf32>
    %c6_31 = arith.constant 6 : index
    %c0_32 = arith.constant 0 : index
    %41 = vector.load %arg6[%c6_31, %c0_32] : memref<56x128xf32, #tpu.memory_space<vmem>>, vector<1x128xf32>
    tpu.vector_store %arg6[%c6_31, %c0_32], %40 {strides = array<i32>} : memref<56x128xf32, #tpu.memory_space<vmem>>, vector<1x128xf32>,
    %c7 = arith.constant 7 : index
    %42 = memref.load %arg0[%c7] : memref<56xi32, #tpu.memory_space<smem>>
    %c0_i32_33 = arith.constant 0 : i32
    %c49_i32_34 = arith.constant 49 : i32
    %43 = arith.maxsi %c0_i32_33, %42 : i32
    %44 = arith.minsi %c49_i32_34, %43 : i32
    %45 = arith.index_cast %44 : i32 to index
    %c0_35 = arith.constant 0 : index
    %46 = vector.load %arg1[%45, %c0_35] : memref<50x128xf32, #tpu.memory_space<vmem>>, vector<1x128xf32>
    %c7_36 = arith.constant 7 : index
    %c0_37 = arith.constant 0 : index
    %47 = vector.load %arg6[%c7_36, %c0_37] : memref<56x128xf32, #tpu.memory_space<vmem>>, vector<1x128xf32>
    tpu.vector_store %arg6[%c7_36, %c0_37], %46 {strides = array<i32>} : memref<56x128xf32, #tpu.memory_space<vmem>>, vector<1x128xf32>,
    %c8 = arith.constant 8 : index
    %48 = memref.load %arg0[%c8] : memref<56xi32, #tpu.memory_space<smem>>
    %c0_i32_38 = arith.constant 0 : i32
    %c49_i32_39 = arith.constant 49 : i32
    %49 = arith.maxsi %c0_i32_38, %48 : i32
    %50 = arith.minsi %c49_i32_39, %49 : i32
    %51 = arith.index_cast %50 : i32 to index
    %c0_40 = arith.constant 0 : index
    %52 = vector.load %arg1[%51, %c0_40] : memref<50x128xf32, #tpu.memory_space<vmem>>, vector<1x128xf32>
    %c8_41 = arith.constant 8 : index
    %c0_42 = arith.constant 0 : index
    %53 = vector.load %arg6[%c8_41, %c0_42] : memref<56x128xf32, #tpu.memory_space<vmem>>, vector<1x128xf32>
    tpu.vector_store %arg6[%c8_41, %c0_42], %52 {strides = array<i32>} : memref<56x128xf32, #tpu.memory_space<vmem>>, vector<1x128xf32>,
    %c9 = arith.constant 9 : index
    %54 = memref.load %arg0[%c9] : memref<56xi32, #tpu.memory_space<smem>>
    %c0_i32_43 = arith.constant 0 : i32
    %c49_i32_44 = arith.constant 49 : i32
    %55 = arith.maxsi %c0_i32_43, %54 : i32
    %56 = arith.minsi %c49_i32_44, %55 : i32
    %57 = arith.index_cast %56 : i32 to index
    %c0_45 = arith.constant 0 : index
    %58 = vector.load %arg1[%57, %c0_45] : memref<50x128xf32, #tpu.memory_space<vmem>>, vector<1x128xf32>
    %c9_46 = arith.constant 9 : index
    %c0_47 = arith.constant 0 : index
    %59 = vector.load %arg6[%c9_46, %c0_47] : memref<56x128xf32, #tpu.memory_space<vmem>>, vector<1x128xf32>
    tpu.vector_store %arg6[%c9_46, %c0_47], %58 {strides = array<i32>} : memref<56x128xf32, #tpu.memory_space<vmem>>, vector<1x128xf32>,
    %c10 = arith.constant 10 : index
    %60 = memref.load %arg0[%c10] : memref<56xi32, #tpu.memory_space<smem>>
    %c0_i32_48 = arith.constant 0 : i32
    %c49_i32_49 = arith.constant 49 : i32
    %61 = arith.maxsi %c0_i32_48, %60 : i32
    %62 = arith.minsi %c49_i32_49, %61 : i32
    %63 = arith.index_cast %62 : i32 to index
    %c0_50 = arith.constant 0 : index
    %64 = vector.load %arg1[%63, %c0_50] : memref<50x128xf32, #tpu.memory_space<vmem>>, vector<1x128xf32>
    %c10_51 = arith.constant 10 : index
    %c0_52 = arith.constant 0 : index
    %65 = vector.load %arg6[%c10_51, %c0_52] : memref<56x128xf32, #tpu.memory_space<vmem>>, vector<1x128xf32>
    tpu.vector_store %arg6[%c10_51, %c0_52], %64 {strides = array<i32>} : memref<56x128xf32, #tpu.memory_space<vmem>>, vector<1x128xf32>,
    %c11 = arith.constant 11 : index
    %66 = memref.load %arg0[%c11] : memref<56xi32, #tpu.memory_space<smem>>
    %c0_i32_53 = arith.constant 0 : i32
    %c49_i32_54 = arith.constant 49 : i32
    %67 = arith.maxsi %c0_i32_53, %66 : i32
    %68 = arith.minsi %c49_i32_54, %67 : i32
    %69 = arith.index_cast %68 : i32 to index
    %c0_55 = arith.constant 0 : index
    %70 = vector.load %arg1[%69, %c0_55] : memref<50x128xf32, #tpu.memory_space<vmem>>, vector<1x128xf32>
    %c11_56 = arith.constant 11 : index
    %c0_57 = arith.constant 0 : index
    %71 = vector.load %arg6[%c11_56, %c0_57] : memref<56x128xf32, #tpu.memory_space<vmem>>, vector<1x128xf32>
    tpu.vector_store %arg6[%c11_56, %c0_57], %70 {strides = array<i32>} : memref<56x128xf32, #tpu.memory_space<vmem>>, vector<1x128xf32>,
    %c12 = arith.constant 12 : index
    %72 = memref.load %arg0[%c12] : memref<56xi32, #tpu.memory_space<smem>>
    %c0_i32_58 = arith.constant 0 : i32
    %c49_i32_59 = arith.constant 49 : i32
    %73 = arith.maxsi %c0_i32_58, %72 : i32
    %74 = arith.minsi %c49_i32_59, %73 : i32
    %75 = arith.index_cast %74 : i32 to index
    %c0_60 = arith.constant 0 : index
    %76 = vector.load %arg1[%75, %c0_60] : memref<50x128xf32, #tpu.memory_space<vmem>>, vector<1x128xf32>
    %c12_61 = arith.constant 12 : index
    %c0_62 = arith.constant 0 : index
    %77 = vector.load %arg6[%c12_61, %c0_62] : memref<56x128xf32, #tpu.memory_space<vmem>>, vector<1x128xf32>
    tpu.vector_store %arg6[%c12_61, %c0_62], %76 {strides = array<i32>} : memref<56x128xf32, #tpu.memory_space<vmem>>, vector<1x128xf32>,
    %c13 = arith.constant 13 : index
    %78 = memref.load %arg0[%c13] : memref<56xi32, #tpu.memory_space<smem>>
    %c0_i32_63 = arith.constant 0 : i32
    %c49_i32_64 = arith.constant 49 : i32
    %79 = arith.maxsi %c0_i32_63, %78 : i32
    %80 = arith.minsi %c49_i32_64, %79 : i32
    %81 = arith.index_cast %80 : i32 to index
    %c0_65 = arith.constant 0 : index
    %82 = vector.load %arg1[%81, %c0_65] : memref<50x128xf32, #tpu.memory_space<vmem>>, vector<1x128xf32>
    %c13_66 = arith.constant 13 : index
    %c0_67 = arith.constant 0 : index
    %83 = vector.load %arg6[%c13_66, %c0_67] : memref<56x128xf32, #tpu.memory_space<vmem>>, vector<1x128xf32>
    tpu.vector_store %arg6[%c13_66, %c0_67], %82 {strides = array<i32>} : memref<56x128xf32, #tpu.memory_space<vmem>>, vector<1x128xf32>,
    %c14 = arith.constant 14 : index
    %84 = memref.load %arg0[%c14] : memref<56xi32, #tpu.memory_space<smem>>
    %c0_i32_68 = arith.constant 0 : i32
    %c49_i32_69 = arith.constant 49 : i32
    %85 = arith.maxsi %c0_i32_68, %84 : i32
    %86 = arith.minsi %c49_i32_69, %85 : i32
    %87 = arith.index_cast %86 : i32 to index
    %c0_70 = arith.constant 0 : index
    %88 = vector.load %arg1[%87, %c0_70] : memref<50x128xf32, #tpu.memory_space<vmem>>, vector<1x128xf32>
    %c14_71 = arith.constant 14 : index
    %c0_72 = arith.constant 0 : index
    %89 = vector.load %arg6[%c14_71, %c0_72] : memref<56x128xf32, #tpu.memory_space<vmem>>, vector<1x128xf32>
    tpu.vector_store %arg6[%c14_71, %c0_72], %88 {strides = array<i32>} : memref<56x128xf32, #tpu.memory_space<vmem>>, vector<1x128xf32>,
    %c15 = arith.constant 15 : index
    %90 = memref.load %arg0[%c15] : memref<56xi32, #tpu.memory_space<smem>>
    %c0_i32_73 = arith.constant 0 : i32
    %c49_i32_74 = arith.constant 49 : i32
    %91 = arith.maxsi %c0_i32_73, %90 : i32
    %92 = arith.minsi %c49_i32_74, %91 : i32
    %93 = arith.index_cast %92 : i32 to index
    %c0_75 = arith.constant 0 : index
    %94 = vector.load %arg1[%93, %c0_75] : memref<50x128xf32, #tpu.memory_space<vmem>>, vector<1x128xf32>
    %c15_76 = arith.constant 15 : index
    %c0_77 = arith.constant 0 : index
    %95 = vector.load %arg6[%c15_76, %c0_77] : memref<56x128xf32, #tpu.memory_space<vmem>>, vector<1x128xf32>
    tpu.vector_store %arg6[%c15_76, %c0_77], %94 {strides = array<i32>} : memref<56x128xf32, #tpu.memory_space<vmem>>, vector<1x128xf32>,
    %c16 = arith.constant 16 : index
    %96 = memref.load %arg0[%c16] : memref<56xi32, #tpu.memory_space<smem>>
    %c0_i32_78 = arith.constant 0 : i32
    %c49_i32_79 = arith.constant 49 : i32
    %97 = arith.maxsi %c0_i32_78, %96 : i32
    %98 = arith.minsi %c49_i32_79, %97 : i32
    %99 = arith.index_cast %98 : i32 to index
    %c0_80 = arith.constant 0 : index
    %100 = vector.load %arg1[%99, %c0_80] : memref<50x128xf32, #tpu.memory_space<vmem>>, vector<1x128xf32>
    %c16_81 = arith.constant 16 : index
    %c0_82 = arith.constant 0 : index
    %101 = vector.load %arg6[%c16_81, %c0_82] : memref<56x128xf32, #tpu.memory_space<vmem>>, vector<1x128xf32>
    tpu.vector_store %arg6[%c16_81, %c0_82], %100 {strides = array<i32>} : memref<56x128xf32, #tpu.memory_space<vmem>>, vector<1x128xf32>,
    %c17 = arith.constant 17 : index
    %102 = memref.load %arg0[%c17] : memref<56xi32, #tpu.memory_space<smem>>
    %c0_i32_83 = arith.constant 0 : i32
    %c49_i32_84 = arith.constant 49 : i32
    %103 = arith.maxsi %c0_i32_83, %102 : i32
    %104 = arith.minsi %c49_i32_84, %103 : i32
    %105 = arith.index_cast %104 : i32 to index
    %c0_85 = arith.constant 0 : index
    %106 = vector.load %arg1[%105, %c0_85] : memref<50x128xf32, #tpu.memory_space<vmem>>, vector<1x128xf32>
    %c17_86 = arith.constant 17 : index
    %c0_87 = arith.constant 0 : index
    %107 = vector.load %arg6[%c17_86, %c0_87] : memref<56x128xf32, #tpu.memory_space<vmem>>, vector<1x128xf32>
    tpu.vector_store %arg6[%c17_86, %c0_87], %106 {strides = array<i32>} : memref<56x128xf32, #tpu.memory_space<vmem>>, vector<1x128xf32>,
    %c18 = arith.constant 18 : index
    %108 = memref.load %arg0[%c18] : memref<56xi32, #tpu.memory_space<smem>>
    %c0_i32_88 = arith.constant 0 : i32
    %c49_i32_89 = arith.constant 49 : i32
    %109 = arith.maxsi %c0_i32_88, %108 : i32
    %110 = arith.minsi %c49_i32_89, %109 : i32
    %111 = arith.index_cast %110 : i32 to index
    %c0_90 = arith.constant 0 : index
    %112 = vector.load %arg1[%111, %c0_90] : memref<50x128xf32, #tpu.memory_space<vmem>>, vector<1x128xf32>
    %c18_91 = arith.constant 18 : index
    %c0_92 = arith.constant 0 : index
    %113 = vector.load %arg6[%c18_91, %c0_92] : memref<56x128xf32, #tpu.memory_space<vmem>>, vector<1x128xf32>
    tpu.vector_store %arg6[%c18_91, %c0_92], %112 {strides = array<i32>} : memref<56x128xf32, #tpu.memory_space<vmem>>, vector<1x128xf32>,
    %c19 = arith.constant 19 : index
    %114 = memref.load %arg0[%c19] : memref<56xi32, #tpu.memory_space<smem>>
    %c0_i32_93 = arith.constant 0 : i32
    %c49_i32_94 = arith.constant 49 : i32
    %115 = arith.maxsi %c0_i32_93, %114 : i32
    %116 = arith.minsi %c49_i32_94, %115 : i32
    %117 = arith.index_cast %116 : i32 to index
    %c0_95 = arith.constant 0 : index
    %118 = vector.load %arg1[%117, %c0_95] : memref<50x128xf32, #tpu.memory_space<vmem>>, vector<1x128xf32>
    %c19_96 = arith.constant 19 : index
    %c0_97 = arith.constant 0 : index
    %119 = vector.load %arg6[%c19_96, %c0_97] : memref<56x128xf32, #tpu.memory_space<vmem>>, vector<1x128xf32>
    tpu.vector_store %arg6[%c19_96, %c0_97], %118 {strides = array<i32>} : memref<56x128xf32, #tpu.memory_space<vmem>>, vector<1x128xf32>,
    %c20 = arith.constant 20 : index
    %120 = memref.load %arg0[%c20] : memref<56xi32, #tpu.memory_space<smem>>
    %c0_i32_98 = arith.constant 0 : i32
    %c49_i32_99 = arith.constant 49 : i32
    %121 = arith.maxsi %c0_i32_98, %120 : i32
    %122 = arith.minsi %c49_i32_99, %121 : i32
    %123 = arith.index_cast %122 : i32 to index
    %c0_100 = arith.constant 0 : index
    %124 = vector.load %arg1[%123, %c0_100] : memref<50x128xf32, #tpu.memory_space<vmem>>, vector<1x128xf32>
    %c20_101 = arith.constant 20 : index
    %c0_102 = arith.constant 0 : index
    %125 = vector.load %arg6[%c20_101, %c0_102] : memref<56x128xf32, #tpu.memory_space<vmem>>, vector<1x128xf32>
    tpu.vector_store %arg6[%c20_101, %c0_102], %124 {strides = array<i32>} : memref<56x128xf32, #tpu.memory_space<vmem>>, vector<1x128xf32>,
    %c21 = arith.constant 21 : index
    %126 = memref.load %arg0[%c21] : memref<56xi32, #tpu.memory_space<smem>>
    %c0_i32_103 = arith.constant 0 : i32
    %c49_i32_104 = arith.constant 49 : i32
    %127 = arith.maxsi %c0_i32_103, %126 : i32
    %128 = arith.minsi %c49_i32_104, %127 : i32
    %129 = arith.index_cast %128 : i32 to index
    %c0_105 = arith.constant 0 : index
    %130 = vector.load %arg1[%129, %c0_105] : memref<50x128xf32, #tpu.memory_space<vmem>>, vector<1x128xf32>
    %c21_106 = arith.constant 21 : index
    %c0_107 = arith.constant 0 : index
    %131 = vector.load %arg6[%c21_106, %c0_107] : memref<56x128xf32, #tpu.memory_space<vmem>>, vector<1x128xf32>
    tpu.vector_store %arg6[%c21_106, %c0_107], %130 {strides = array<i32>} : memref<56x128xf32, #tpu.memory_space<vmem>>, vector<1x128xf32>,
    %c22 = arith.constant 22 : index
    %132 = memref.load %arg0[%c22] : memref<56xi32, #tpu.memory_space<smem>>
    %c0_i32_108 = arith.constant 0 : i32
    %c49_i32_109 = arith.constant 49 : i32
    %133 = arith.maxsi %c0_i32_108, %132 : i32
    %134 = arith.minsi %c49_i32_109, %133 : i32
    %135 = arith.index_cast %134 : i32 to index
    %c0_110 = arith.constant 0 : index
    %136 = vector.load %arg1[%135, %c0_110] : memref<50x128xf32, #tpu.memory_space<vmem>>, vector<1x128xf32>
    %c22_111 = arith.constant 22 : index
    %c0_112 = arith.constant 0 : index
    %137 = vector.load %arg6[%c22_111, %c0_112] : memref<56x128xf32, #tpu.memory_space<vmem>>, vector<1x128xf32>
    tpu.vector_store %arg6[%c22_111, %c0_112], %136 {strides = array<i32>} : memref<56x128xf32, #tpu.memory_space<vmem>>, vector<1x128xf32>,
    %c23 = arith.constant 23 : index
    %138 = memref.load %arg0[%c23] : memref<56xi32, #tpu.memory_space<smem>>
    %c0_i32_113 = arith.constant 0 : i32
    %c49_i32_114 = arith.constant 49 : i32
    %139 = arith.maxsi %c0_i32_113, %138 : i32
    %140 = arith.minsi %c49_i32_114, %139 : i32
    %141 = arith.index_cast %140 : i32 to index
    %c0_115 = arith.constant 0 : index
    %142 = vector.load %arg1[%141, %c0_115] : memref<50x128xf32, #tpu.memory_space<vmem>>, vector<1x128xf32>
    %c23_116 = arith.constant 23 : index
    %c0_117 = arith.constant 0 : index
    %143 = vector.load %arg6[%c23_116, %c0_117] : memref<56x128xf32, #tpu.memory_space<vmem>>, vector<1x128xf32>
    tpu.vector_store %arg6[%c23_116, %c0_117], %142 {strides = array<i32>} : memref<56x128xf32, #tpu.memory_space<vmem>>, vector<1x128xf32>,
    %c24 = arith.constant 24 : index
    %144 = memref.load %arg0[%c24] : memref<56xi32, #tpu.memory_space<smem>>
    %c0_i32_118 = arith.constant 0 : i32
    %c49_i32_119 = arith.constant 49 : i32
    %145 = arith.maxsi %c0_i32_118, %144 : i32
    %146 = arith.minsi %c49_i32_119, %145 : i32
    %147 = arith.index_cast %146 : i32 to index
    %c0_120 = arith.constant 0 : index
    %148 = vector.load %arg1[%147, %c0_120] : memref<50x128xf32, #tpu.memory_space<vmem>>, vector<1x128xf32>
    %c24_121 = arith.constant 24 : index
    %c0_122 = arith.constant 0 : index
    %149 = vector.load %arg6[%c24_121, %c0_122] : memref<56x128xf32, #tpu.memory_space<vmem>>, vector<1x128xf32>
    tpu.vector_store %arg6[%c24_121, %c0_122], %148 {strides = array<i32>} : memref<56x128xf32, #tpu.memory_space<vmem>>, vector<1x128xf32>,
    %c25 = arith.constant 25 : index
    %150 = memref.load %arg0[%c25] : memref<56xi32, #tpu.memory_space<smem>>
    %c0_i32_123 = arith.constant 0 : i32
    %c49_i32_124 = arith.constant 49 : i32
    %151 = arith.maxsi %c0_i32_123, %150 : i32
    %152 = arith.minsi %c49_i32_124, %151 : i32
    %153 = arith.index_cast %152 : i32 to index
    %c0_125 = arith.constant 0 : index
    %154 = vector.load %arg1[%153, %c0_125] : memref<50x128xf32, #tpu.memory_space<vmem>>, vector<1x128xf32>
    %c25_126 = arith.constant 25 : index
    %c0_127 = arith.constant 0 : index
    %155 = vector.load %arg6[%c25_126, %c0_127] : memref<56x128xf32, #tpu.memory_space<vmem>>, vector<1x128xf32>
    tpu.vector_store %arg6[%c25_126, %c0_127], %154 {strides = array<i32>} : memref<56x128xf32, #tpu.memory_space<vmem>>, vector<1x128xf32>,
    %c26 = arith.constant 26 : index
    %156 = memref.load %arg0[%c26] : memref<56xi32, #tpu.memory_space<smem>>
    %c0_i32_128 = arith.constant 0 : i32
    %c49_i32_129 = arith.constant 49 : i32
    %157 = arith.maxsi %c0_i32_128, %156 : i32
    %158 = arith.minsi %c49_i32_129, %157 : i32
    %159 = arith.index_cast %158 : i32 to index
    %c0_130 = arith.constant 0 : index
    %160 = vector.load %arg1[%159, %c0_130] : memref<50x128xf32, #tpu.memory_space<vmem>>, vector<1x128xf32>
    %c26_131 = arith.constant 26 : index
    %c0_132 = arith.constant 0 : index
    %161 = vector.load %arg6[%c26_131, %c0_132] : memref<56x128xf32, #tpu.memory_space<vmem>>, vector<1x128xf32>
    tpu.vector_store %arg6[%c26_131, %c0_132], %160 {strides = array<i32>} : memref<56x128xf32, #tpu.memory_space<vmem>>, vector<1x128xf32>,
    %c27 = arith.constant 27 : index
    %162 = memref.load %arg0[%c27] : memref<56xi32, #tpu.memory_space<smem>>
    %c0_i32_133 = arith.constant 0 : i32
    %c49_i32_134 = arith.constant 49 : i32
    %163 = arith.maxsi %c0_i32_133, %162 : i32
    %164 = arith.minsi %c49_i32_134, %163 : i32
    %165 = arith.index_cast %164 : i32 to index
    %c0_135 = arith.constant 0 : index
    %166 = vector.load %arg1[%165, %c0_135] : memref<50x128xf32, #tpu.memory_space<vmem>>, vector<1x128xf32>
    %c27_136 = arith.constant 27 : index
    %c0_137 = arith.constant 0 : index
    %167 = vector.load %arg6[%c27_136, %c0_137] : memref<56x128xf32, #tpu.memory_space<vmem>>, vector<1x128xf32>
    tpu.vector_store %arg6[%c27_136, %c0_137], %166 {strides = array<i32>} : memref<56x128xf32, #tpu.memory_space<vmem>>, vector<1x128xf32>,
    %c28 = arith.constant 28 : index
    %168 = memref.load %arg0[%c28] : memref<56xi32, #tpu.memory_space<smem>>
    %c0_i32_138 = arith.constant 0 : i32
    %c49_i32_139 = arith.constant 49 : i32
    %169 = arith.maxsi %c0_i32_138, %168 : i32
    %170 = arith.minsi %c49_i32_139, %169 : i32
    %171 = arith.index_cast %170 : i32 to index
    %c0_140 = arith.constant 0 : index
    %172 = vector.load %arg1[%171, %c0_140] : memref<50x128xf32, #tpu.memory_space<vmem>>, vector<1x128xf32>
    %c28_141 = arith.constant 28 : index
    %c0_142 = arith.constant 0 : index
    %173 = vector.load %arg6[%c28_141, %c0_142] : memref<56x128xf32, #tpu.memory_space<vmem>>, vector<1x128xf32>
    tpu.vector_store %arg6[%c28_141, %c0_142], %172 {strides = array<i32>} : memref<56x128xf32, #tpu.memory_space<vmem>>, vector<1x128xf32>,
    %c29 = arith.constant 29 : index
    %174 = memref.load %arg0[%c29] : memref<56xi32, #tpu.memory_space<smem>>
    %c0_i32_143 = arith.constant 0 : i32
    %c49_i32_144 = arith.constant 49 : i32
    %175 = arith.maxsi %c0_i32_143, %174 : i32
    %176 = arith.minsi %c49_i32_144, %175 : i32
    %177 = arith.index_cast %176 : i32 to index
    %c0_145 = arith.constant 0 : index
    %178 = vector.load %arg1[%177, %c0_145] : memref<50x128xf32, #tpu.memory_space<vmem>>, vector<1x128xf32>
    %c29_146 = arith.constant 29 : index
    %c0_147 = arith.constant 0 : index
    %179 = vector.load %arg6[%c29_146, %c0_147] : memref<56x128xf32, #tpu.memory_space<vmem>>, vector<1x128xf32>
    tpu.vector_store %arg6[%c29_146, %c0_147], %178 {strides = array<i32>} : memref<56x128xf32, #tpu.memory_space<vmem>>, vector<1x128xf32>,
    %c30 = arith.constant 30 : index
    %180 = memref.load %arg0[%c30] : memref<56xi32, #tpu.memory_space<smem>>
    %c0_i32_148 = arith.constant 0 : i32
    %c49_i32_149 = arith.constant 49 : i32
    %181 = arith.maxsi %c0_i32_148, %180 : i32
    %182 = arith.minsi %c49_i32_149, %181 : i32
    %183 = arith.index_cast %182 : i32 to index
    %c0_150 = arith.constant 0 : index
    %184 = vector.load %arg1[%183, %c0_150] : memref<50x128xf32, #tpu.memory_space<vmem>>, vector<1x128xf32>
    %c30_151 = arith.constant 30 : index
    %c0_152 = arith.constant 0 : index
    %185 = vector.load %arg6[%c30_151, %c0_152] : memref<56x128xf32, #tpu.memory_space<vmem>>, vector<1x128xf32>
    tpu.vector_store %arg6[%c30_151, %c0_152], %184 {strides = array<i32>} : memref<56x128xf32, #tpu.memory_space<vmem>>, vector<1x128xf32>,
    %c31 = arith.constant 31 : index
    %186 = memref.load %arg0[%c31] : memref<56xi32, #tpu.memory_space<smem>>
    %c0_i32_153 = arith.constant 0 : i32
    %c49_i32_154 = arith.constant 49 : i32
    %187 = arith.maxsi %c0_i32_153, %186 : i32
    %188 = arith.minsi %c49_i32_154, %187 : i32
    %189 = arith.index_cast %188 : i32 to index
    %c0_155 = arith.constant 0 : index
    %190 = vector.load %arg1[%189, %c0_155] : memref<50x128xf32, #tpu.memory_space<vmem>>, vector<1x128xf32>
    %c31_156 = arith.constant 31 : index
    %c0_157 = arith.constant 0 : index
    %191 = vector.load %arg6[%c31_156, %c0_157] : memref<56x128xf32, #tpu.memory_space<vmem>>, vector<1x128xf32>
    tpu.vector_store %arg6[%c31_156, %c0_157], %190 {strides = array<i32>} : memref<56x128xf32, #tpu.memory_space<vmem>>, vector<1x128xf32>,
    %c32 = arith.constant 32 : index
    %192 = memref.load %arg0[%c32] : memref<56xi32, #tpu.memory_space<smem>>
    %c0_i32_158 = arith.constant 0 : i32
    %c49_i32_159 = arith.constant 49 : i32
    %193 = arith.maxsi %c0_i32_158, %192 : i32
    %194 = arith.minsi %c49_i32_159, %193 : i32
    %195 = arith.index_cast %194 : i32 to index
    %c0_160 = arith.constant 0 : index
    %196 = vector.load %arg1[%195, %c0_160] : memref<50x128xf32, #tpu.memory_space<vmem>>, vector<1x128xf32>
    %c32_161 = arith.constant 32 : index
    %c0_162 = arith.constant 0 : index
    %197 = vector.load %arg6[%c32_161, %c0_162] : memref<56x128xf32, #tpu.memory_space<vmem>>, vector<1x128xf32>
    tpu.vector_store %arg6[%c32_161, %c0_162], %196 {strides = array<i32>} : memref<56x128xf32, #tpu.memory_space<vmem>>, vector<1x128xf32>,
    %c33 = arith.constant 33 : index
    %198 = memref.load %arg0[%c33] : memref<56xi32, #tpu.memory_space<smem>>
    %c0_i32_163 = arith.constant 0 : i32
    %c49_i32_164 = arith.constant 49 : i32
    %199 = arith.maxsi %c0_i32_163, %198 : i32
    %200 = arith.minsi %c49_i32_164, %199 : i32
    %201 = arith.index_cast %200 : i32 to index
    %c0_165 = arith.constant 0 : index
    %202 = vector.load %arg1[%201, %c0_165] : memref<50x128xf32, #tpu.memory_space<vmem>>, vector<1x128xf32>
    %c33_166 = arith.constant 33 : index
    %c0_167 = arith.constant 0 : index
    %203 = vector.load %arg6[%c33_166, %c0_167] : memref<56x128xf32, #tpu.memory_space<vmem>>, vector<1x128xf32>
    tpu.vector_store %arg6[%c33_166, %c0_167], %202 {strides = array<i32>} : memref<56x128xf32, #tpu.memory_space<vmem>>, vector<1x128xf32>,
    %c34 = arith.constant 34 : index
    %204 = memref.load %arg0[%c34] : memref<56xi32, #tpu.memory_space<smem>>
    %c0_i32_168 = arith.constant 0 : i32
    %c49_i32_169 = arith.constant 49 : i32
    %205 = arith.maxsi %c0_i32_168, %204 : i32
    %206 = arith.minsi %c49_i32_169, %205 : i32
    %207 = arith.index_cast %206 : i32 to index
    %c0_170 = arith.constant 0 : index
    %208 = vector.load %arg1[%207, %c0_170] : memref<50x128xf32, #tpu.memory_space<vmem>>, vector<1x128xf32>
    %c34_171 = arith.constant 34 : index
    %c0_172 = arith.constant 0 : index
    %209 = vector.load %arg6[%c34_171, %c0_172] : memref<56x128xf32, #tpu.memory_space<vmem>>, vector<1x128xf32>
    tpu.vector_store %arg6[%c34_171, %c0_172], %208 {strides = array<i32>} : memref<56x128xf32, #tpu.memory_space<vmem>>, vector<1x128xf32>,
    %c35 = arith.constant 35 : index
    %210 = memref.load %arg0[%c35] : memref<56xi32, #tpu.memory_space<smem>>
    %c0_i32_173 = arith.constant 0 : i32
    %c49_i32_174 = arith.constant 49 : i32
    %211 = arith.maxsi %c0_i32_173, %210 : i32
    %212 = arith.minsi %c49_i32_174, %211 : i32
    %213 = arith.index_cast %212 : i32 to index
    %c0_175 = arith.constant 0 : index
    %214 = vector.load %arg1[%213, %c0_175] : memref<50x128xf32, #tpu.memory_space<vmem>>, vector<1x128xf32>
    %c35_176 = arith.constant 35 : index
    %c0_177 = arith.constant 0 : index
    %215 = vector.load %arg6[%c35_176, %c0_177] : memref<56x128xf32, #tpu.memory_space<vmem>>, vector<1x128xf32>
    tpu.vector_store %arg6[%c35_176, %c0_177], %214 {strides = array<i32>} : memref<56x128xf32, #tpu.memory_space<vmem>>, vector<1x128xf32>,
    %c36 = arith.constant 36 : index
    %216 = memref.load %arg0[%c36] : memref<56xi32, #tpu.memory_space<smem>>
    %c0_i32_178 = arith.constant 0 : i32
    %c49_i32_179 = arith.constant 49 : i32
    %217 = arith.maxsi %c0_i32_178, %216 : i32
    %218 = arith.minsi %c49_i32_179, %217 : i32
    %219 = arith.index_cast %218 : i32 to index
    %c0_180 = arith.constant 0 : index
    %220 = vector.load %arg1[%219, %c0_180] : memref<50x128xf32, #tpu.memory_space<vmem>>, vector<1x128xf32>
    %c36_181 = arith.constant 36 : index
    %c0_182 = arith.constant 0 : index
    %221 = vector.load %arg6[%c36_181, %c0_182] : memref<56x128xf32, #tpu.memory_space<vmem>>, vector<1x128xf32>
    tpu.vector_store %arg6[%c36_181, %c0_182], %220 {strides = array<i32>} : memref<56x128xf32, #tpu.memory_space<vmem>>, vector<1x128xf32>,
    %c37 = arith.constant 37 : index
    %222 = memref.load %arg0[%c37] : memref<56xi32, #tpu.memory_space<smem>>
    %c0_i32_183 = arith.constant 0 : i32
    %c49_i32_184 = arith.constant 49 : i32
    %223 = arith.maxsi %c0_i32_183, %222 : i32
    %224 = arith.minsi %c49_i32_184, %223 : i32
    %225 = arith.index_cast %224 : i32 to index
    %c0_185 = arith.constant 0 : index
    %226 = vector.load %arg1[%225, %c0_185] : memref<50x128xf32, #tpu.memory_space<vmem>>, vector<1x128xf32>
    %c37_186 = arith.constant 37 : index
    %c0_187 = arith.constant 0 : index
    %227 = vector.load %arg6[%c37_186, %c0_187] : memref<56x128xf32, #tpu.memory_space<vmem>>, vector<1x128xf32>
    tpu.vector_store %arg6[%c37_186, %c0_187], %226 {strides = array<i32>} : memref<56x128xf32, #tpu.memory_space<vmem>>, vector<1x128xf32>,
    %c38 = arith.constant 38 : index
    %228 = memref.load %arg0[%c38] : memref<56xi32, #tpu.memory_space<smem>>
    %c0_i32_188 = arith.constant 0 : i32
    %c49_i32_189 = arith.constant 49 : i32
    %229 = arith.maxsi %c0_i32_188, %228 : i32
    %230 = arith.minsi %c49_i32_189, %229 : i32
    %231 = arith.index_cast %230 : i32 to index
    %c0_190 = arith.constant 0 : index
    %232 = vector.load %arg1[%231, %c0_190] : memref<50x128xf32, #tpu.memory_space<vmem>>, vector<1x128xf32>
    %c38_191 = arith.constant 38 : index
    %c0_192 = arith.constant 0 : index
    %233 = vector.load %arg6[%c38_191, %c0_192] : memref<56x128xf32, #tpu.memory_space<vmem>>, vector<1x128xf32>
    tpu.vector_store %arg6[%c38_191, %c0_192], %232 {strides = array<i32>} : memref<56x128xf32, #tpu.memory_space<vmem>>, vector<1x128xf32>,
    %c39 = arith.constant 39 : index
    %234 = memref.load %arg0[%c39] : memref<56xi32, #tpu.memory_space<smem>>
    %c0_i32_193 = arith.constant 0 : i32
    %c49_i32_194 = arith.constant 49 : i32
    %235 = arith.maxsi %c0_i32_193, %234 : i32
    %236 = arith.minsi %c49_i32_194, %235 : i32
    %237 = arith.index_cast %236 : i32 to index
    %c0_195 = arith.constant 0 : index
    %238 = vector.load %arg1[%237, %c0_195] : memref<50x128xf32, #tpu.memory_space<vmem>>, vector<1x128xf32>
    %c39_196 = arith.constant 39 : index
    %c0_197 = arith.constant 0 : index
    %239 = vector.load %arg6[%c39_196, %c0_197] : memref<56x128xf32, #tpu.memory_space<vmem>>, vector<1x128xf32>
    tpu.vector_store %arg6[%c39_196, %c0_197], %238 {strides = array<i32>} : memref<56x128xf32, #tpu.memory_space<vmem>>, vector<1x128xf32>,
    %c40 = arith.constant 40 : index
    %240 = memref.load %arg0[%c40] : memref<56xi32, #tpu.memory_space<smem>>
    %c0_i32_198 = arith.constant 0 : i32
    %c49_i32_199 = arith.constant 49 : i32
    %241 = arith.maxsi %c0_i32_198, %240 : i32
    %242 = arith.minsi %c49_i32_199, %241 : i32
    %243 = arith.index_cast %242 : i32 to index
    %c0_200 = arith.constant 0 : index
    %244 = vector.load %arg1[%243, %c0_200] : memref<50x128xf32, #tpu.memory_space<vmem>>, vector<1x128xf32>
    %c40_201 = arith.constant 40 : index
    %c0_202 = arith.constant 0 : index
    %245 = vector.load %arg6[%c40_201, %c0_202] : memref<56x128xf32, #tpu.memory_space<vmem>>, vector<1x128xf32>
    tpu.vector_store %arg6[%c40_201, %c0_202], %244 {strides = array<i32>} : memref<56x128xf32, #tpu.memory_space<vmem>>, vector<1x128xf32>,
    %c41 = arith.constant 41 : index
    %246 = memref.load %arg0[%c41] : memref<56xi32, #tpu.memory_space<smem>>
    %c0_i32_203 = arith.constant 0 : i32
    %c49_i32_204 = arith.constant 49 : i32
    %247 = arith.maxsi %c0_i32_203, %246 : i32
    %248 = arith.minsi %c49_i32_204, %247 : i32
    %249 = arith.index_cast %248 : i32 to index
    %c0_205 = arith.constant 0 : index
    %250 = vector.load %arg1[%249, %c0_205] : memref<50x128xf32, #tpu.memory_space<vmem>>, vector<1x128xf32>
    %c41_206 = arith.constant 41 : index
    %c0_207 = arith.constant 0 : index
    %251 = vector.load %arg6[%c41_206, %c0_207] : memref<56x128xf32, #tpu.memory_space<vmem>>, vector<1x128xf32>
    tpu.vector_store %arg6[%c41_206, %c0_207], %250 {strides = array<i32>} : memref<56x128xf32, #tpu.memory_space<vmem>>, vector<1x128xf32>,
    %c42 = arith.constant 42 : index
    %252 = memref.load %arg0[%c42] : memref<56xi32, #tpu.memory_space<smem>>
    %c0_i32_208 = arith.constant 0 : i32
    %c49_i32_209 = arith.constant 49 : i32
    %253 = arith.maxsi %c0_i32_208, %252 : i32
    %254 = arith.minsi %c49_i32_209, %253 : i32
    %255 = arith.index_cast %254 : i32 to index
    %c0_210 = arith.constant 0 : index
    %256 = vector.load %arg1[%255, %c0_210] : memref<50x128xf32, #tpu.memory_space<vmem>>, vector<1x128xf32>
    %c42_211 = arith.constant 42 : index
    %c0_212 = arith.constant 0 : index
    %257 = vector.load %arg6[%c42_211, %c0_212] : memref<56x128xf32, #tpu.memory_space<vmem>>, vector<1x128xf32>
    tpu.vector_store %arg6[%c42_211, %c0_212], %256 {strides = array<i32>} : memref<56x128xf32, #tpu.memory_space<vmem>>, vector<1x128xf32>,
    %c43 = arith.constant 43 : index
    %258 = memref.load %arg0[%c43] : memref<56xi32, #tpu.memory_space<smem>>
    %c0_i32_213 = arith.constant 0 : i32
    %c49_i32_214 = arith.constant 49 : i32
    %259 = arith.maxsi %c0_i32_213, %258 : i32
    %260 = arith.minsi %c49_i32_214, %259 : i32
    %261 = arith.index_cast %260 : i32 to index
    %c0_215 = arith.constant 0 : index
    %262 = vector.load %arg1[%261, %c0_215] : memref<50x128xf32, #tpu.memory_space<vmem>>, vector<1x128xf32>
    %c43_216 = arith.constant 43 : index
    %c0_217 = arith.constant 0 : index
    %263 = vector.load %arg6[%c43_216, %c0_217] : memref<56x128xf32, #tpu.memory_space<vmem>>, vector<1x128xf32>
    tpu.vector_store %arg6[%c43_216, %c0_217], %262 {strides = array<i32>} : memref<56x128xf32, #tpu.memory_space<vmem>>, vector<1x128xf32>,
    %c44 = arith.constant 44 : index
    %264 = memref.load %arg0[%c44] : memref<56xi32, #tpu.memory_space<smem>>
    %c0_i32_218 = arith.constant 0 : i32
    %c49_i32_219 = arith.constant 49 : i32
    %265 = arith.maxsi %c0_i32_218, %264 : i32
    %266 = arith.minsi %c49_i32_219, %265 : i32
    %267 = arith.index_cast %266 : i32 to index
    %c0_220 = arith.constant 0 : index
    %268 = vector.load %arg1[%267, %c0_220] : memref<50x128xf32, #tpu.memory_space<vmem>>, vector<1x128xf32>
    %c44_221 = arith.constant 44 : index
    %c0_222 = arith.constant 0 : index
    %269 = vector.load %arg6[%c44_221, %c0_222] : memref<56x128xf32, #tpu.memory_space<vmem>>, vector<1x128xf32>
    tpu.vector_store %arg6[%c44_221, %c0_222], %268 {strides = array<i32>} : memref<56x128xf32, #tpu.memory_space<vmem>>, vector<1x128xf32>,
    %c45 = arith.constant 45 : index
    %270 = memref.load %arg0[%c45] : memref<56xi32, #tpu.memory_space<smem>>
    %c0_i32_223 = arith.constant 0 : i32
    %c49_i32_224 = arith.constant 49 : i32
    %271 = arith.maxsi %c0_i32_223, %270 : i32
    %272 = arith.minsi %c49_i32_224, %271 : i32
    %273 = arith.index_cast %272 : i32 to index
    %c0_225 = arith.constant 0 : index
    %274 = vector.load %arg1[%273, %c0_225] : memref<50x128xf32, #tpu.memory_space<vmem>>, vector<1x128xf32>
    %c45_226 = arith.constant 45 : index
    %c0_227 = arith.constant 0 : index
    %275 = vector.load %arg6[%c45_226, %c0_227] : memref<56x128xf32, #tpu.memory_space<vmem>>, vector<1x128xf32>
    tpu.vector_store %arg6[%c45_226, %c0_227], %274 {strides = array<i32>} : memref<56x128xf32, #tpu.memory_space<vmem>>, vector<1x128xf32>,
    %c46 = arith.constant 46 : index
    %276 = memref.load %arg0[%c46] : memref<56xi32, #tpu.memory_space<smem>>
    %c0_i32_228 = arith.constant 0 : i32
    %c49_i32_229 = arith.constant 49 : i32
    %277 = arith.maxsi %c0_i32_228, %276 : i32
    %278 = arith.minsi %c49_i32_229, %277 : i32
    %279 = arith.index_cast %278 : i32 to index
    %c0_230 = arith.constant 0 : index
    %280 = vector.load %arg1[%279, %c0_230] : memref<50x128xf32, #tpu.memory_space<vmem>>, vector<1x128xf32>
    %c46_231 = arith.constant 46 : index
    %c0_232 = arith.constant 0 : index
    %281 = vector.load %arg6[%c46_231, %c0_232] : memref<56x128xf32, #tpu.memory_space<vmem>>, vector<1x128xf32>
    tpu.vector_store %arg6[%c46_231, %c0_232], %280 {strides = array<i32>} : memref<56x128xf32, #tpu.memory_space<vmem>>, vector<1x128xf32>,
    %c47 = arith.constant 47 : index
    %282 = memref.load %arg0[%c47] : memref<56xi32, #tpu.memory_space<smem>>
    %c0_i32_233 = arith.constant 0 : i32
    %c49_i32_234 = arith.constant 49 : i32
    %283 = arith.maxsi %c0_i32_233, %282 : i32
    %284 = arith.minsi %c49_i32_234, %283 : i32
    %285 = arith.index_cast %284 : i32 to index
    %c0_235 = arith.constant 0 : index
    %286 = vector.load %arg1[%285, %c0_235] : memref<50x128xf32, #tpu.memory_space<vmem>>, vector<1x128xf32>
    %c47_236 = arith.constant 47 : index
    %c0_237 = arith.constant 0 : index
    %287 = vector.load %arg6[%c47_236, %c0_237] : memref<56x128xf32, #tpu.memory_space<vmem>>, vector<1x128xf32>
    tpu.vector_store %arg6[%c47_236, %c0_237], %286 {strides = array<i32>} : memref<56x128xf32, #tpu.memory_space<vmem>>, vector<1x128xf32>,
    %c48 = arith.constant 48 : index
    %288 = memref.load %arg0[%c48] : memref<56xi32, #tpu.memory_space<smem>>
    %c0_i32_238 = arith.constant 0 : i32
    %c49_i32_239 = arith.constant 49 : i32
    %289 = arith.maxsi %c0_i32_238, %288 : i32
    %290 = arith.minsi %c49_i32_239, %289 : i32
    %291 = arith.index_cast %290 : i32 to index
    %c0_240 = arith.constant 0 : index
    %292 = vector.load %arg1[%291, %c0_240] : memref<50x128xf32, #tpu.memory_space<vmem>>, vector<1x128xf32>
    %c48_241 = arith.constant 48 : index
    %c0_242 = arith.constant 0 : index
    %293 = vector.load %arg6[%c48_241, %c0_242] : memref<56x128xf32, #tpu.memory_space<vmem>>, vector<1x128xf32>
    tpu.vector_store %arg6[%c48_241, %c0_242], %292 {strides = array<i32>} : memref<56x128xf32, #tpu.memory_space<vmem>>, vector<1x128xf32>,
    %c49 = arith.constant 49 : index
    %294 = memref.load %arg0[%c49] : memref<56xi32, #tpu.memory_space<smem>>
    %c0_i32_243 = arith.constant 0 : i32
    %c49_i32_244 = arith.constant 49 : i32
    %295 = arith.maxsi %c0_i32_243, %294 : i32
    %296 = arith.minsi %c49_i32_244, %295 : i32
    %297 = arith.index_cast %296 : i32 to index
    %c0_245 = arith.constant 0 : index
    %298 = vector.load %arg1[%297, %c0_245] : memref<50x128xf32, #tpu.memory_space<vmem>>, vector<1x128xf32>
    %c49_246 = arith.constant 49 : index
    %c0_247 = arith.constant 0 : index
    %299 = vector.load %arg6[%c49_246, %c0_247] : memref<56x128xf32, #tpu.memory_space<vmem>>, vector<1x128xf32>
    tpu.vector_store %arg6[%c49_246, %c0_247], %298 {strides = array<i32>} : memref<56x128xf32, #tpu.memory_space<vmem>>, vector<1x128xf32>,
    %c50 = arith.constant 50 : index
    %300 = memref.load %arg0[%c50] : memref<56xi32, #tpu.memory_space<smem>>
    %c0_i32_248 = arith.constant 0 : i32
    %c49_i32_249 = arith.constant 49 : i32
    %301 = arith.maxsi %c0_i32_248, %300 : i32
    %302 = arith.minsi %c49_i32_249, %301 : i32
    %303 = arith.index_cast %302 : i32 to index
    %c0_250 = arith.constant 0 : index
    %304 = vector.load %arg1[%303, %c0_250] : memref<50x128xf32, #tpu.memory_space<vmem>>, vector<1x128xf32>
    %c50_251 = arith.constant 50 : index
    %c0_252 = arith.constant 0 : index
    %305 = vector.load %arg6[%c50_251, %c0_252] : memref<56x128xf32, #tpu.memory_space<vmem>>, vector<1x128xf32>
    tpu.vector_store %arg6[%c50_251, %c0_252], %304 {strides = array<i32>} : memref<56x128xf32, #tpu.memory_space<vmem>>, vector<1x128xf32>,
    %c51 = arith.constant 51 : index
    %306 = memref.load %arg0[%c51] : memref<56xi32, #tpu.memory_space<smem>>
    %c0_i32_253 = arith.constant 0 : i32
    %c49_i32_254 = arith.constant 49 : i32
    %307 = arith.maxsi %c0_i32_253, %306 : i32
    %308 = arith.minsi %c49_i32_254, %307 : i32
    %309 = arith.index_cast %308 : i32 to index
    %c0_255 = arith.constant 0 : index
    %310 = vector.load %arg1[%309, %c0_255] : memref<50x128xf32, #tpu.memory_space<vmem>>, vector<1x128xf32>
    %c51_256 = arith.constant 51 : index
    %c0_257 = arith.constant 0 : index
    %311 = vector.load %arg6[%c51_256, %c0_257] : memref<56x128xf32, #tpu.memory_space<vmem>>, vector<1x128xf32>
    tpu.vector_store %arg6[%c51_256, %c0_257], %310 {strides = array<i32>} : memref<56x128xf32, #tpu.memory_space<vmem>>, vector<1x128xf32>,
    %c52 = arith.constant 52 : index
    %312 = memref.load %arg0[%c52] : memref<56xi32, #tpu.memory_space<smem>>
    %c0_i32_258 = arith.constant 0 : i32
    %c49_i32_259 = arith.constant 49 : i32
    %313 = arith.maxsi %c0_i32_258, %312 : i32
    %314 = arith.minsi %c49_i32_259, %313 : i32
    %315 = arith.index_cast %314 : i32 to index
    %c0_260 = arith.constant 0 : index
    %316 = vector.load %arg1[%315, %c0_260] : memref<50x128xf32, #tpu.memory_space<vmem>>, vector<1x128xf32>
    %c52_261 = arith.constant 52 : index
    %c0_262 = arith.constant 0 : index
    %317 = vector.load %arg6[%c52_261, %c0_262] : memref<56x128xf32, #tpu.memory_space<vmem>>, vector<1x128xf32>
    tpu.vector_store %arg6[%c52_261, %c0_262], %316 {strides = array<i32>} : memref<56x128xf32, #tpu.memory_space<vmem>>, vector<1x128xf32>,
    %c53 = arith.constant 53 : index
    %318 = memref.load %arg0[%c53] : memref<56xi32, #tpu.memory_space<smem>>
    %c0_i32_263 = arith.constant 0 : i32
    %c49_i32_264 = arith.constant 49 : i32
    %319 = arith.maxsi %c0_i32_263, %318 : i32
    %320 = arith.minsi %c49_i32_264, %319 : i32
    %321 = arith.index_cast %320 : i32 to index
    %c0_265 = arith.constant 0 : index
    %322 = vector.load %arg1[%321, %c0_265] : memref<50x128xf32, #tpu.memory_space<vmem>>, vector<1x128xf32>
    %c53_266 = arith.constant 53 : index
    %c0_267 = arith.constant 0 : index
    %323 = vector.load %arg6[%c53_266, %c0_267] : memref<56x128xf32, #tpu.memory_space<vmem>>, vector<1x128xf32>
    tpu.vector_store %arg6[%c53_266, %c0_267], %322 {strides = array<i32>} : memref<56x128xf32, #tpu.memory_space<vmem>>, vector<1x128xf32>,
    %c54 = arith.constant 54 : index
    %324 = memref.load %arg0[%c54] : memref<56xi32, #tpu.memory_space<smem>>
    %c0_i32_268 = arith.constant 0 : i32
    %c49_i32_269 = arith.constant 49 : i32
    %325 = arith.maxsi %c0_i32_268, %324 : i32
    %326 = arith.minsi %c49_i32_269, %325 : i32
    %327 = arith.index_cast %326 : i32 to index
    %c0_270 = arith.constant 0 : index
    %328 = vector.load %arg1[%327, %c0_270] : memref<50x128xf32, #tpu.memory_space<vmem>>, vector<1x128xf32>
    %c54_271 = arith.constant 54 : index
    %c0_272 = arith.constant 0 : index
    %329 = vector.load %arg6[%c54_271, %c0_272] : memref<56x128xf32, #tpu.memory_space<vmem>>, vector<1x128xf32>
    tpu.vector_store %arg6[%c54_271, %c0_272], %328 {strides = array<i32>} : memref<56x128xf32, #tpu.memory_space<vmem>>, vector<1x128xf32>,
    %c55 = arith.constant 55 : index
    %330 = memref.load %arg0[%c55] : memref<56xi32, #tpu.memory_space<smem>>
    %c0_i32_273 = arith.constant 0 : i32
    %c49_i32_274 = arith.constant 49 : i32
    %331 = arith.maxsi %c0_i32_273, %330 : i32
    %332 = arith.minsi %c49_i32_274, %331 : i32
    %333 = arith.index_cast %332 : i32 to index
    %c0_275 = arith.constant 0 : index
    %334 = vector.load %arg1[%333, %c0_275] : memref<50x128xf32, #tpu.memory_space<vmem>>, vector<1x128xf32>
    %c55_276 = arith.constant 55 : index
    %c0_277 = arith.constant 0 : index
    %335 = vector.load %arg6[%c55_276, %c0_277] : memref<56x128xf32, #tpu.memory_space<vmem>>, vector<1x128xf32>
    tpu.vector_store %arg6[%c55_276, %c0_277], %334 {strides = array<i32>} : memref<56x128xf32, #tpu.memory_space<vmem>>, vector<1x128xf32>,
    %c0_278 = arith.constant 0 : index
    %c0_279 = arith.constant 0 : index
    %336 = vector.load %arg6[%c0_278, %c0_279] : memref<56x128xf32, #tpu.memory_space<vmem>>, vector<56x128xf32>
    %c0_280 = arith.constant 0 : index
    %c0_281 = arith.constant 0 : index
    %337 = vector.load %arg4[%c0_280, %c0_281] : memref<2x128xf32, #tpu.memory_space<vmem>>, vector<1x128xf32>
    %c1_282 = arith.constant 1 : index
    %c0_283 = arith.constant 0 : index
    %338 = vector.load %arg4[%c1_282, %c0_283] : memref<2x128xf32, #tpu.memory_space<vmem>>, vector<1x128xf32>
    %339 = arith.truncf %336 : vector<56x128xf32> to vector<56x128xbf16>
    %c0_284 = arith.constant 0 : index
    %c0_285 = arith.constant 0 : index
    %340 = vector.load %arg2[%c0_284, %c0_285] : memref<128x128xbf16, #tpu.memory_space<vmem>>, vector<128x128xbf16>
    %cst = arith.constant dense<0.000000e+00> : vector<56x128xf32>
    %341 = tpu.matmul %339, %340, %cst {dimension_numbers = #tpu.dot_dimension_numbers<[1], [0], [0], [1], [0, 0, 1, 1], [], []>} : vector<56x128xbf16>, vector<128x128xbf16>, vector<56x128xf32> -> vector<56x128xf32>
    %342 = vector.broadcast %337 : vector<1x128xf32> to vector<56x128xf32>
    %343 = arith.addf %341, %342 : vector<56x128xf32>
    %344 = arith.negf %343 : vector<56x128xf32>
    %345 = math.exp %344 : vector<56x128xf32>
    %cst_286 = arith.constant 1.000000e+00 : f32
    %346 = vector.broadcast %cst_286 : f32 to vector<56x128xf32>
    %347 = arith.addf %346, %345 : vector<56x128xf32>
    %348 = arith.divf %346, %347 : vector<56x128xf32>
    %349 = arith.mulf %343, %348 : vector<56x128xf32>
    %350 = arith.truncf %349 : vector<56x128xf32> to vector<56x128xbf16>
    %c0_287 = arith.constant 0 : index
    %c0_288 = arith.constant 0 : index
    %351 = vector.load %arg3[%c0_287, %c0_288] : memref<128x128xbf16, #tpu.memory_space<vmem>>, vector<128x128xbf16>
    %cst_289 = arith.constant dense<0.000000e+00> : vector<56x128xf32>
    %352 = tpu.matmul %350, %351, %cst_289 {dimension_numbers = #tpu.dot_dimension_numbers<[1], [0], [0], [1], [0, 0, 1, 1], [], []>} : vector<56x128xbf16>, vector<128x128xbf16>, vector<56x128xf32> -> vector<56x128xf32>
    %353 = vector.broadcast %338 : vector<1x128xf32> to vector<56x128xf32>
    %354 = arith.addf %352, %353 : vector<56x128xf32>
    %355 = arith.negf %354 : vector<56x128xf32>
    %356 = math.exp %355 : vector<56x128xf32>
    %cst_290 = arith.constant 1.000000e+00 : f32
    %357 = vector.broadcast %cst_290 : f32 to vector<56x128xf32>
    %358 = arith.addf %357, %356 : vector<56x128xf32>
    %359 = arith.divf %357, %358 : vector<56x128xf32>
    %360 = arith.mulf %354, %359 : vector<56x128xf32>
    %c0_291 = arith.constant 0 : index
    %c0_292 = arith.constant 0 : index
    %361 = vector.load %arg5[%c0_291, %c0_292] : memref<56x128xf32, #tpu.memory_space<vmem>>, vector<56x128xf32>
    tpu.vector_store %arg5[%c0_291, %c0_292], %360 {strides = array<i32>} : memref<56x128xf32, #tpu.memory_space<vmem>>, vector<56x128xf32>,
    return
  }
}

</mosaic_0001>

<llo_original>
// kernel: tpu_custom_call.1
$region0: #{tpu_custom_call.1}
  #allocation0 [shape = 'u32[]', space=smem, size = 0x4, offset = 0x4, fixed_abs, tag = 'smem constant byte address 0x4 - core index']
  #allocation1 [shape = 'u32[144,128]{1,0:T(1,128)}', space=vmem, size = 0x12000, scoped, tag = 'internal scratch']
  #allocation2 [shape = 'f32[56,128]{1,0:T(8,128)}', space=vmem, size = 0x7000, scoped, tag = 'scratch operand']
  %s0 = inlined_call_operand.hbm [shape: s32[56], index: 0, kind: input, shape index: {}]
  %s1 = inlined_call_operand.hbm [shape: f32[50,128], index: 1, kind: input, shape index: {}]
  %s2 = inlined_call_operand.hbm [shape: bf16[128,128], index: 2, kind: input, shape index: {}]
  %s3 = inlined_call_operand.hbm [shape: bf16[128,128], index: 3, kind: input, shape index: {}]
  %s4 = inlined_call_operand.vmem [shape: f32[2,128], index: 4, kind: input, shape index: {}]
  %s5 = inlined_call_operand.hbm [shape: f32[56,128], index: 5, kind: output, shape index: {}]
  %s6 = sld [smem:[#allocation0]]
  $region46: #{tpu_custom_call.1} parent=0
    _
  %s8 = ssub.s32 1, %s6
  %s9 = scalar_select 0, %s8, %s6
  $region1: #{tpu_custom_call.1} parent=0
    #allocation3 [shape = 'u8[512]{0}', space=smem, size = 0x200, scoped, tag = 'input window, operand 0, single buffered']
    #allocation4 [shape = 's32[1]{0}', space=sflag, size = 0x4, scoped, tag = 'scoped memory for tpu_custom_call.1']
    #allocation5 [shape = 's32[1]{0}', space=sflag, size = 0x4, scoped, tag = 'scoped memory for tpu_custom_call.1']
    #allocation6 [shape = 's32[1]{0}', space=sflag, size = 0x4, scoped, tag = 'scoped memory for tpu_custom_call.1']
    #allocation7 [shape = 'u8[28672]{0}', space=vmem, size = 0x7000, scoped, tag = 'input window, operand 1, single buffered']
    #allocation8 [shape = 'u8[32768]{0}', space=vmem, size = 0x8000, scoped, tag = 'input window, operand 2, single buffered']
    #allocation9 [shape = 's32[1]{0}', space=sflag, size = 0x4, scoped, tag = 'scoped memory for tpu_custom_call.1']
    #allocation10 [shape = 'u8[32768]{0}', space=vmem, size = 0x8000, scoped, tag = 'input window, operand 3, single buffered']
    #allocation11 [shape = 'u8[28672]{0}', space=vmem, size = 0x7000, scoped, tag = 'output window, operand 0, single buffered']
    %10 = vsyncpa [#allocation6], 0
    %11 = vsyncpa [#allocation4], 0
    %12 = vsyncpa [#allocation9], 0
    %13 = vsyncpa [#allocation5], 0
    // Predicated region
    $region2: #{tpu_custom_call.1} parent=1 // pred_check
      _
    $region3: #{tpu_custom_call.1} parent=1 // pred_check_branch
      %15 = sbr.rel (0) target = $region5
    $region4: #{tpu_custom_call.1} parent=1 // pred_region
      %s17 = ssub.s32 16, 16
      %18 = vsyncadd [#allocation6], %s17
      %21 = dma.hbm_to_smem %s0, 16, [#allocation3], [#allocation6]
    $region5: #{tpu_custom_call.1} parent=1 // pred_fallthru
      _
    // Predicated region
    $region6: #{tpu_custom_call.1} parent=1 // pred_check
      _
    $region7: #{tpu_custom_call.1} parent=1 // pred_check_branch
      %23 = sbr.rel (0) target = $region9
    $region8: #{tpu_custom_call.1} parent=1 // pred_region
      %s25 = ssub.s32 896, 896
      %26 = vsyncadd [#allocation4], %s25
      %s27 = sshll.u32 [#allocation7], 4
      %s28 = int_to_ptr.vmem [resolvable:$true] %s27
      %33 = dma.hbm_to_vmem [thread:$0]  %s1, 896, %s28, [#allocation4], 128, 128, 8
    $region9: #{tpu_custom_call.1} parent=1 // pred_fallthru
      _
    // Predicated region
    $region10: #{tpu_custom_call.1} parent=1 // pred_check
      _
    $region11: #{tpu_custom_call.1} parent=1 // pred_check_branch
      %35 = sbr.rel (0) target = $region13
    $region12: #{tpu_custom_call.1} parent=1 // pred_region
      %s37 = ssub.s32 1024, 1024
      %38 = vsyncadd [#allocation9], %s37
      %s39 = sshll.u32 [#allocation8], 4
      %s40 = int_to_ptr.vmem [resolvable:$true] %s39
      %45 = dma.hbm_to_vmem [thread:$0]  %s2, 1024, %s40, [#allocation9], 64, 64, 4
    $region13: #{tpu_custom_call.1} parent=1 // pred_fallthru
      _
    // Predicated region
    $region14: #{tpu_custom_call.1} parent=1 // pred_check
      _
    $region15: #{tpu_custom_call.1} parent=1 // pred_check_branch
      %47 = sbr.rel (0) target = $region17
    $region16: #{tpu_custom_call.1} parent=1 // pred_region
      %s49 = ssub.s32 1024, 1024
      %50 = vsyncadd [#allocation9], %s49
      %s51 = sshll.u32 [#allocation10], 4
      %s52 = int_to_ptr.vmem [resolvable:$true] %s51
      %57 = dma.hbm_to_vmem [thread:$0]  %s3, 1024, %s52, [#allocation9], 64, 64, 4
    $region17: #{tpu_custom_call.1} parent=1 // pred_fallthru
      _
    // Predicated region
    $region18: #{tpu_custom_call.1} parent=1 // pred_check
      _
    $region19: #{tpu_custom_call.1} parent=1 // pred_check_branch
      %59 = sbr.rel (0) target = $region21
    $region20: #{tpu_custom_call.1} parent=1 // pred_region
      _
    $region21: #{tpu_custom_call.1} parent=1 // pred_fallthru
      _
    // Predicated region
    $region22: #{tpu_custom_call.1} parent=1 // pred_check
      _
    $region23: #{tpu_custom_call.1} parent=1 // pred_check_branch
      %61 = sbr.rel (0) target = $region25
    $region24: #{tpu_custom_call.1} parent=1 // pred_region
      %62 = dma.done [#allocation6], 16
    $region25: #{tpu_custom_call.1} parent=1 // pred_fallthru
      _
    // Predicated region
    $region26: #{tpu_custom_call.1} parent=1 // pred_check
      _
    $region27: #{tpu_custom_call.1} parent=1 // pred_check_branch
      %64 = sbr.rel (0) target = $region29
    $region28: #{tpu_custom_call.1} parent=1 // pred_region
      %65 = dma.done [#allocation4], 896
    $region29: #{tpu_custom_call.1} parent=1 // pred_fallthru
      _
    // Predicated region
    $region30: #{tpu_custom_call.1} parent=1 // pred_check
      _
    $region31: #{tpu_custom_call.1} parent=1 // pred_check_branch
      %67 = sbr.rel (0) target = $region33
    $region32: #{tpu_custom_call.1} parent=1 // pred_region
      %68 = dma.done [#allocation9], 1024
    $region33: #{tpu_custom_call.1} parent=1 // pred_fallthru
      _
    // Predicated region
    $region34: #{tpu_custom_call.1} parent=1 // pred_check
      _
    $region35: #{tpu_custom_call.1} parent=1 // pred_check_branch
      %70 = sbr.rel (0) target = $region37
    $region36: #{tpu_custom_call.1} parent=1 // pred_region
      %71 = dma.done [#allocation9], 1024
    $region37: #{tpu_custom_call.1} parent=1 // pred_fallthru
      _
    %72 = sfence
    %s74 = sld [smem:[#allocation3]]
    %p75 = scmp.gt.s32.totalorder %s74, 0
    %s76 = scalar_select %p75, %s74, 0
    %p77 = scmp.lt.s32.totalorder %s76, 49
    %s78 = scalar_select %p77, %s76, 49
    %s79 = scalar_lea.vmem [#allocation7], %s78
    %v80 = vld [vmem:[%s79] sm:$0x1]
    %81 = vst [vmem:[#allocation2] sm:$0x1] %v80
    %s82 = sld [smem:[#allocation3 + $0x1]]
    %p83 = scmp.gt.s32.totalorder %s82, 0
    %s84 = scalar_select %p83, %s82, 0
    %p85 = scmp.lt.s32.totalorder %s84, 49
    %s86 = scalar_select %p85, %s84, 49
    %s87 = scalar_lea.vmem [#allocation7], %s86
    %v88 = vld [vmem:[%s87] sm:$0x1]
    %89 = vst [vmem:[#allocation2 + $0x1] sm:$0x1] %v88
    %s90 = sld [smem:[#allocation3 + $0x2]]
    %p91 = scmp.gt.s32.totalorder %s90, 0
    %s92 = scalar_select %p91, %s90, 0
    %p93 = scmp.lt.s32.totalorder %s92, 49
    %s94 = scalar_select %p93, %s92, 49
    %s95 = scalar_lea.vmem [#allocation7], %s94
    %v96 = vld [vmem:[%s95] sm:$0x1]
    %97 = vst [vmem:[#allocation2 + $0x2] sm:$0x1] %v96
    %s98 = sld [smem:[#allocation3 + $0x3]]
    %p99 = scmp.gt.s32.totalorder %s98, 0
    %s100 = scalar_select %p99, %s98, 0
    %p101 = scmp.lt.s32.totalorder %s100, 49
    %s102 = scalar_select %p101, %s100, 49
    %s103 = scalar_lea.vmem [#allocation7], %s102
    %v104 = vld [vmem:[%s103] sm:$0x1]
    %105 = vst [vmem:[#allocation2 + $0x3] sm:$0x1] %v104
    %s106 = sld [smem:[#allocation3 + $0x4]]
    %p107 = scmp.gt.s32.totalorder %s106, 0
    %s108 = scalar_select %p107, %s106, 0
    %p109 = scmp.lt.s32.totalorder %s108, 49
    %s110 = scalar_select %p109, %s108, 49
    %s111 = scalar_lea.vmem [#allocation7], %s110
    %v112 = vld [vmem:[%s111] sm:$0x1]
    %113 = vst [vmem:[#allocation2 + $0x4] sm:$0x1] %v112
    %s114 = sld [smem:[#allocation3 + $0x5]]
    %p115 = scmp.gt.s32.totalorder %s114, 0
    %s116 = scalar_select %p115, %s114, 0
    %p117 = scmp.lt.s32.totalorder %s116, 49
    %s118 = scalar_select %p117, %s116, 49
    %s119 = scalar_lea.vmem [#allocation7], %s118
    %v120 = vld [vmem:[%s119] sm:$0x1]
    %121 = vst [vmem:[#allocation2 + $0x5] sm:$0x1] %v120
    %s122 = sld [smem:[#allocation3 + $0x6]]
    %p123 = scmp.gt.s32.totalorder %s122, 0
    %s124 = scalar_select %p123, %s122, 0
    %p125 = scmp.lt.s32.totalorder %s124, 49
    %s126 = scalar_select %p125, %s124, 49
    %s127 = scalar_lea.vmem [#allocation7], %s126
    %v128 = vld [vmem:[%s127] sm:$0x1]
    %129 = vst [vmem:[#allocation2 + $0x6] sm:$0x1] %v128
    %s130 = sld [smem:[#allocation3 + $0x7]]
    %p131 = scmp.gt.s32.totalorder %s130, 0
    %s132 = scalar_select %p131, %s130, 0
    %p133 = scmp.lt.s32.totalorder %s132, 49
    %s134 = scalar_select %p133, %s132, 49
    %s135 = scalar_lea.vmem [#allocation7], %s134
    %v136 = vld [vmem:[%s135] sm:$0x1]
    %137 = vst [vmem:[#allocation2 + $0x7] sm:$0x1] %v136
    %s138 = sld [smem:[#allocation3 + $0x8]]
    %p139 = scmp.gt.s32.totalorder %s138, 0
    %s140 = scalar_select %p139, %s138, 0
    %p141 = scmp.lt.s32.totalorder %s140, 49
    %s142 = scalar_select %p141, %s140, 49
    %s143 = scalar_lea.vmem [#allocation7], %s142
    %v144 = vld [vmem:[%s143] sm:$0x1]
    %145 = vst [vmem:[#allocation2 + $0x8] sm:$0x1] %v144
    %s146 = sld [smem:[#allocation3 + $0x9]]
    %p147 = scmp.gt.s32.totalorder %s146, 0
    %s148 = scalar_select %p147, %s146, 0
    %p149 = scmp.lt.s32.totalorder %s148, 49
    %s150 = scalar_select %p149, %s148, 49
    %s151 = scalar_lea.vmem [#allocation7], %s150
    %v152 = vld [vmem:[%s151] sm:$0x1]
    %153 = vst [vmem:[#allocation2 + $0x9] sm:$0x1] %v152
    %s154 = sld [smem:[#allocation3 + $0xa]]
    %p155 = scmp.gt.s32.totalorder %s154, 0
    %s156 = scalar_select %p155, %s154, 0
    %p157 = scmp.lt.s32.totalorder %s156, 49
    %s158 = scalar_select %p157, %s156, 49
    %s159 = scalar_lea.vmem [#allocation7], %s158
    %v160 = vld [vmem:[%s159] sm:$0x1]
    %161 = vst [vmem:[#allocation2 + $0xa] sm:$0x1] %v160
    %s162 = sld [smem:[#allocation3 + $0xb]]
    %p163 = scmp.gt.s32.totalorder %s162, 0
    %s164 = scalar_select %p163, %s162, 0
    %p165 = scmp.lt.s32.totalorder %s164, 49
    %s166 = scalar_select %p165, %s164, 49
    %s167 = scalar_lea.vmem [#allocation7], %s166
    %v168 = vld [vmem:[%s167] sm:$0x1]
    %169 = vst [vmem:[#allocation2 + $0xb] sm:$0x1] %v168
    %s170 = sld [smem:[#allocation3 + $0xc]]
    %p171 = scmp.gt.s32.totalorder %s170, 0
    %s172 = scalar_select %p171, %s170, 0
    %p173 = scmp.lt.s32.totalorder %s172, 49
    %s174 = scalar_select %p173, %s172, 49
    %s175 = scalar_lea.vmem [#allocation7], %s174
    %v176 = vld [vmem:[%s175] sm:$0x1]
    %177 = vst [vmem:[#allocation2 + $0xc] sm:$0x1] %v176
    %s178 = sld [smem:[#allocation3 + $0xd]]
    %p179 = scmp.gt.s32.totalorder %s178, 0
    %s180 = scalar_select %p179, %s178, 0
    %p181 = scmp.lt.s32.totalorder %s180, 49
    %s182 = scalar_select %p181, %s180, 49
    %s183 = scalar_lea.vmem [#allocation7], %s182
    %v184 = vld [vmem:[%s183] sm:$0x1]
    %185 = vst [vmem:[#allocation2 + $0xd] sm:$0x1] %v184
    %s186 = sld [smem:[#allocation3 + $0xe]]
    %p187 = scmp.gt.s32.totalorder %s186, 0
    %s188 = scalar_select %p187, %s186, 0
    %p189 = scmp.lt.s32.totalorder %s188, 49
    %s190 = scalar_select %p189, %s188, 49
    %s191 = scalar_lea.vmem [#allocation7], %s190
    %v192 = vld [vmem:[%s191] sm:$0x1]
    %193 = vst [vmem:[#allocation2 + $0xe] sm:$0x1] %v192
    %s194 = sld [smem:[#allocation3 + $0xf]]
    %p195 = scmp.gt.s32.totalorder %s194, 0
    %s196 = scalar_select %p195, %s194, 0
    %p197 = scmp.lt.s32.totalorder %s196, 49
    %s198 = scalar_select %p197, %s196, 49
    %s199 = scalar_lea.vmem [#allocation7], %s198
    %v200 = vld [vmem:[%s199] sm:$0x1]
    %201 = vst [vmem:[#allocation2 + $0xf] sm:$0x1] %v200
    %s202 = sld [smem:[#allocation3 + $0x10]]
    %p203 = scmp.gt.s32.totalorder %s202, 0
    %s204 = scalar_select %p203, %s202, 0
    %p205 = scmp.lt.s32.totalorder %s204, 49
    %s206 = scalar_select %p205, %s204, 49
    %s207 = scalar_lea.vmem [#allocation7], %s206
    %v208 = vld [vmem:[%s207] sm:$0x1]
    %209 = vst [vmem:[#allocation2 + $0x10] sm:$0x1] %v208
    %s210 = sld [smem:[#allocation3 + $0x11]]
    %p211 = scmp.gt.s32.totalorder %s210, 0
    %s212 = scalar_select %p211, %s210, 0
    %p213 = scmp.lt.s32.totalorder %s212, 49
    %s214 = scalar_select %p213, %s212, 49
    %s215 = scalar_lea.vmem [#allocation7], %s214
    %v216 = vld [vmem:[%s215] sm:$0x1]
    %217 = vst [vmem:[#allocation2 + $0x11] sm:$0x1] %v216
    %s218 = sld [smem:[#allocation3 + $0x12]]
    %p219 = scmp.gt.s32.totalorder %s218, 0
    %s220 = scalar_select %p219, %s218, 0
    %p221 = scmp.lt.s32.totalorder %s220, 49
    %s222 = scalar_select %p221, %s220, 49
    %s223 = scalar_lea.vmem [#allocation7], %s222
    %v224 = vld [vmem:[%s223] sm:$0x1]
    %225 = vst [vmem:[#allocation2 + $0x12] sm:$0x1] %v224
    %s226 = sld [smem:[#allocation3 + $0x13]]
    %p227 = scmp.gt.s32.totalorder %s226, 0
    %s228 = scalar_select %p227, %s226, 0
    %p229 = scmp.lt.s32.totalorder %s228, 49
    %s230 = scalar_select %p229, %s228, 49
    %s231 = scalar_lea.vmem [#allocation7], %s230
    %v232 = vld [vmem:[%s231] sm:$0x1]
    %233 = vst [vmem:[#allocation2 + $0x13] sm:$0x1] %v232
    %s234 = sld [smem:[#allocation3 + $0x14]]
    %p235 = scmp.gt.s32.totalorder %s234, 0
    %s236 = scalar_select %p235, %s234, 0
    %p237 = scmp.lt.s32.totalorder %s236, 49
    %s238 = scalar_select %p237, %s236, 49
    %s239 = scalar_lea.vmem [#allocation7], %s238
    %v240 = vld [vmem:[%s239] sm:$0x1]
    %241 = vst [vmem:[#allocation2 + $0x14] sm:$0x1] %v240
    %s242 = sld [smem:[#allocation3 + $0x15]]
    %p243 = scmp.gt.s32.totalorder %s242, 0
    %s244 = scalar_select %p243, %s242, 0
    %p245 = scmp.lt.s32.totalorder %s244, 49
    %s246 = scalar_select %p245, %s244, 49
    %s247 = scalar_lea.vmem [#allocation7], %s246
    %v248 = vld [vmem:[%s247] sm:$0x1]
    %249 = vst [vmem:[#allocation2 + $0x15] sm:$0x1] %v248
    %s250 = sld [smem:[#allocation3 + $0x16]]
    %p251 = scmp.gt.s32.totalorder %s250, 0
    %s252 = scalar_select %p251, %s250, 0
    %p253 = scmp.lt.s32.totalorder %s252, 49
    %s254 = scalar_select %p253, %s252, 49
    %s255 = scalar_lea.vmem [#allocation7], %s254
    %v256 = vld [vmem:[%s255] sm:$0x1]
    %257 = vst [vmem:[#allocation2 + $0x16] sm:$0x1] %v256
    %s258 = sld [smem:[#allocation3 + $0x17]]
    %p259 = scmp.gt.s32.totalorder %s258, 0
    %s260 = scalar_select %p259, %s258, 0
    %p261 = scmp.lt.s32.totalorder %s260, 49
    %s262 = scalar_select %p261, %s260, 49
    %s263 = scalar_lea.vmem [#allocation7], %s262
    %v264 = vld [vmem:[%s263] sm:$0x1]
    %265 = vst [vmem:[#allocation2 + $0x17] sm:$0x1] %v264
    %s266 = sld [smem:[#allocation3 + $0x18]]
    %p267 = scmp.gt.s32.totalorder %s266, 0
    %s268 = scalar_select %p267, %s266, 0
    %p269 = scmp.lt.s32.totalorder %s268, 49
    %s270 = scalar_select %p269, %s268, 49
    %s271 = scalar_lea.vmem [#allocation7], %s270
    %v272 = vld [vmem:[%s271] sm:$0x1]
    %273 = vst [vmem:[#allocation2 + $0x18] sm:$0x1] %v272
    %s274 = sld [smem:[#allocation3 + $0x19]]
    %p275 = scmp.gt.s32.totalorder %s274, 0
    %s276 = scalar_select %p275, %s274, 0
    %p277 = scmp.lt.s32.totalorder %s276, 49
    %s278 = scalar_select %p277, %s276, 49
    %s279 = scalar_lea.vmem [#allocation7], %s278
    %v280 = vld [vmem:[%s279] sm:$0x1]
    %281 = vst [vmem:[#allocation2 + $0x19] sm:$0x1] %v280
    %s282 = sld [smem:[#allocation3 + $0x1a]]
    %p283 = scmp.gt.s32.totalorder %s282, 0
    %s284 = scalar_select %p283, %s282, 0
    %p285 = scmp.lt.s32.totalorder %s284, 49
    %s286 = scalar_select %p285, %s284, 49
    %s287 = scalar_lea.vmem [#allocation7], %s286
    %v288 = vld [vmem:[%s287] sm:$0x1]
    %289 = vst [vmem:[#allocation2 + $0x1a] sm:$0x1] %v288
    %s290 = sld [smem:[#allocation3 + $0x1b]]
    %p291 = scmp.gt.s32.totalorder %s290, 0
    %s292 = scalar_select %p291, %s290, 0
    %p293 = scmp.lt.s32.totalorder %s292, 49
    %s294 = scalar_select %p293, %s292, 49
    %s295 = scalar_lea.vmem [#allocation7], %s294
    %v296 = vld [vmem:[%s295] sm:$0x1]
    %297 = vst [vmem:[#allocation2 + $0x1b] sm:$0x1] %v296
    %s298 = sld [smem:[#allocation3 + $0x1c]]
    %p299 = scmp.gt.s32.totalorder %s298, 0
    %s300 = scalar_select %p299, %s298, 0
    %p301 = scmp.lt.s32.totalorder %s300, 49
    %s302 = scalar_select %p301, %s300, 49
    %s303 = scalar_lea.vmem [#allocation7], %s302
    %v304 = vld [vmem:[%s303] sm:$0x1]
    %305 = vst [vmem:[#allocation2 + $0x1c] sm:$0x1] %v304
    %s306 = sld [smem:[#allocation3 + $0x1d]]
    %p307 = scmp.gt.s32.totalorder %s306, 0
    %s308 = scalar_select %p307, %s306, 0
    %p309 = scmp.lt.s32.totalorder %s308, 49
    %s310 = scalar_select %p309, %s308, 49
    %s311 = scalar_lea.vmem [#allocation7], %s310
    %v312 = vld [vmem:[%s311] sm:$0x1]
    %313 = vst [vmem:[#allocation2 + $0x1d] sm:$0x1] %v312
    %s314 = sld [smem:[#allocation3 + $0x1e]]
    %p315 = scmp.gt.s32.totalorder %s314, 0
    %s316 = scalar_select %p315, %s314, 0
    %p317 = scmp.lt.s32.totalorder %s316, 49
    %s318 = scalar_select %p317, %s316, 49
    %s319 = scalar_lea.vmem [#allocation7], %s318
    %v320 = vld [vmem:[%s319] sm:$0x1]
    %321 = vst [vmem:[#allocation2 + $0x1e] sm:$0x1] %v320
    %s322 = sld [smem:[#allocation3 + $0x1f]]
    %p323 = scmp.gt.s32.totalorder %s322, 0
    %s324 = scalar_select %p323, %s322, 0
    %p325 = scmp.lt.s32.totalorder %s324, 49
    %s326 = scalar_select %p325, %s324, 49
    %s327 = scalar_lea.vmem [#allocation7], %s326
    %v328 = vld [vmem:[%s327] sm:$0x1]
    %329 = vst [vmem:[#allocation2 + $0x1f] sm:$0x1] %v328
    %s330 = sld [smem:[#allocation3 + $0x20]]
    %p331 = scmp.gt.s32.totalorder %s330, 0
    %s332 = scalar_select %p331, %s330, 0
    %p333 = scmp.lt.s32.totalorder %s332, 49
    %s334 = scalar_select %p333, %s332, 49
    %s335 = scalar_lea.vmem [#allocation7], %s334
    %v336 = vld [vmem:[%s335] sm:$0x1]
    %337 = vst [vmem:[#allocation2 + $0x20] sm:$0x1] %v336
    %s338 = sld [smem:[#allocation3 + $0x21]]
    %p339 = scmp.gt.s32.totalorder %s338, 0
    %s340 = scalar_select %p339, %s338, 0
    %p341 = scmp.lt.s32.totalorder %s340, 49
    %s342 = scalar_select %p341, %s340, 49
    %s343 = scalar_lea.vmem [#allocation7], %s342
    %v344 = vld [vmem:[%s343] sm:$0x1]
    %345 = vst [vmem:[#allocation2 + $0x21] sm:$0x1] %v344
    %s346 = sld [smem:[#allocation3 + $0x22]]
    %p347 = scmp.gt.s32.totalorder %s346, 0
    %s348 = scalar_select %p347, %s346, 0
    %p349 = scmp.lt.s32.totalorder %s348, 49
    %s350 = scalar_select %p349, %s348, 49
    %s351 = scalar_lea.vmem [#allocation7], %s350
    %v352 = vld [vmem:[%s351] sm:$0x1]
    %353 = vst [vmem:[#allocation2 + $0x22] sm:$0x1] %v352
    %s354 = sld [smem:[#allocation3 + $0x23]]
    %p355 = scmp.gt.s32.totalorder %s354, 0
    %s356 = scalar_select %p355, %s354, 0
    %p357 = scmp.lt.s32.totalorder %s356, 49
    %s358 = scalar_select %p357, %s356, 49
    %s359 = scalar_lea.vmem [#allocation7], %s358
    %v360 = vld [vmem:[%s359] sm:$0x1]
    %361 = vst [vmem:[#allocation2 + $0x23] sm:$0x1] %v360
    %s362 = sld [smem:[#allocation3 + $0x24]]
    %p363 = scmp.gt.s32.totalorder %s362, 0
    %s364 = scalar_select %p363, %s362, 0
    %p365 = scmp.lt.s32.totalorder %s364, 49
    %s366 = scalar_select %p365, %s364, 49
    %s367 = scalar_lea.vmem [#allocation7], %s366
    %v368 = vld [vmem:[%s367] sm:$0x1]
    %369 = vst [vmem:[#allocation2 + $0x24] sm:$0x1] %v368
    %s370 = sld [smem:[#allocation3 + $0x25]]
    %p371 = scmp.gt.s32.totalorder %s370, 0
    %s372 = scalar_select %p371, %s370, 0
    %p373 = scmp.lt.s32.totalorder %s372, 49
    %s374 = scalar_select %p373, %s372, 49
    %s375 = scalar_lea.vmem [#allocation7], %s374
    %v376 = vld [vmem:[%s375] sm:$0x1]
    %377 = vst [vmem:[#allocation2 + $0x25] sm:$0x1] %v376
    %s378 = sld [smem:[#allocation3 + $0x26]]
    %p379 = scmp.gt.s32.totalorder %s378, 0
    %s380 = scalar_select %p379, %s378, 0
    %p381 = scmp.lt.s32.totalorder %s380, 49
    %s382 = scalar_select %p381, %s380, 49
    %s383 = scalar_lea.vmem [#allocation7], %s382
    %v384 = vld [vmem:[%s383] sm:$0x1]
    %385 = vst [vmem:[#allocation2 + $0x26] sm:$0x1] %v384
    %s386 = sld [smem:[#allocation3 + $0x27]]
    %p387 = scmp.gt.s32.totalorder %s386, 0
    %s388 = scalar_select %p387, %s386, 0
    %p389 = scmp.lt.s32.totalorder %s388, 49
    %s390 = scalar_select %p389, %s388, 49
    %s391 = scalar_lea.vmem [#allocation7], %s390
    %v392 = vld [vmem:[%s391] sm:$0x1]
    %393 = vst [vmem:[#allocation2 + $0x27] sm:$0x1] %v392
    %s394 = sld [smem:[#allocation3 + $0x28]]
    %p395 = scmp.gt.s32.totalorder %s394, 0
    %s396 = scalar_select %p395, %s394, 0
    %p397 = scmp.lt.s32.totalorder %s396, 49
    %s398 = scalar_select %p397, %s396, 49
    %s399 = scalar_lea.vmem [#allocation7], %s398
    %v400 = vld [vmem:[%s399] sm:$0x1]
    %401 = vst [vmem:[#allocation2 + $0x28] sm:$0x1] %v400
    %s402 = sld [smem:[#allocation3 + $0x29]]
    %p403 = scmp.gt.s32.totalorder %s402, 0
    %s404 = scalar_select %p403, %s402, 0
    %p405 = scmp.lt.s32.totalorder %s404, 49
    %s406 = scalar_select %p405, %s404, 49
    %s407 = scalar_lea.vmem [#allocation7], %s406
    %v408 = vld [vmem:[%s407] sm:$0x1]
    %409 = vst [vmem:[#allocation2 + $0x29] sm:$0x1] %v408
    %s410 = sld [smem:[#allocation3 + $0x2a]]
    %p411 = scmp.gt.s32.totalorder %s410, 0
    %s412 = scalar_select %p411, %s410, 0
    %p413 = scmp.lt.s32.totalorder %s412, 49
    %s414 = scalar_select %p413, %s412, 49
    %s415 = scalar_lea.vmem [#allocation7], %s414
    %v416 = vld [vmem:[%s415] sm:$0x1]
    %417 = vst [vmem:[#allocation2 + $0x2a] sm:$0x1] %v416
    %s418 = sld [smem:[#allocation3 + $0x2b]]
    %p419 = scmp.gt.s32.totalorder %s418, 0
    %s420 = scalar_select %p419, %s418, 0
    %p421 = scmp.lt.s32.totalorder %s420, 49
    %s422 = scalar_select %p421, %s420, 49
    %s423 = scalar_lea.vmem [#allocation7], %s422
    %v424 = vld [vmem:[%s423] sm:$0x1]
    %425 = vst [vmem:[#allocation2 + $0x2b] sm:$0x1] %v424
    %s426 = sld [smem:[#allocation3 + $0x2c]]
    %p427 = scmp.gt.s32.totalorder %s426, 0
    %s428 = scalar_select %p427, %s426, 0
    %p429 = scmp.lt.s32.totalorder %s428, 49
    %s430 = scalar_select %p429, %s428, 49
    %s431 = scalar_lea.vmem [#allocation7], %s430
    %v432 = vld [vmem:[%s431] sm:$0x1]
    %433 = vst [vmem:[#allocation2 + $0x2c] sm:$0x1] %v432
    %s434 = sld [smem:[#allocation3 + $0x2d]]
    %p435 = scmp.gt.s32.totalorder %s434, 0
    %s436 = scalar_select %p435, %s434, 0
    %p437 = scmp.lt.s32.totalorder %s436, 49
    %s438 = scalar_select %p437, %s436, 49
    %s439 = scalar_lea.vmem [#allocation7], %s438
    %v440 = vld [vmem:[%s439] sm:$0x1]
    %441 = vst [vmem:[#allocation2 + $0x2d] sm:$0x1] %v440
    %s442 = sld [smem:[#allocation3 + $0x2e]]
    %p443 = scmp.gt.s32.totalorder %s442, 0
    %s444 = scalar_select %p443, %s442, 0
    %p445 = scmp.lt.s32.totalorder %s444, 49
    %s446 = scalar_select %p445, %s444, 49
    %s447 = scalar_lea.vmem [#allocation7], %s446
    %v448 = vld [vmem:[%s447] sm:$0x1]
    %449 = vst [vmem:[#allocation2 + $0x2e] sm:$0x1] %v448
    %s450 = sld [smem:[#allocation3 + $0x2f]]
    %p451 = scmp.gt.s32.totalorder %s450, 0
    %s452 = scalar_select %p451, %s450, 0
    %p453 = scmp.lt.s32.totalorder %s452, 49
    %s454 = scalar_select %p453, %s452, 49
    %s455 = scalar_lea.vmem [#allocation7], %s454
    %v456 = vld [vmem:[%s455] sm:$0x1]
    %457 = vst [vmem:[#allocation2 + $0x2f] sm:$0x1] %v456
    %s458 = sld [smem:[#allocation3 + $0x30]]
    %p459 = scmp.gt.s32.totalorder %s458, 0
    %s460 = scalar_select %p459, %s458, 0
    %p461 = scmp.lt.s32.totalorder %s460, 49
    %s462 = scalar_select %p461, %s460, 49
    %s463 = scalar_lea.vmem [#allocation7], %s462
    %v464 = vld [vmem:[%s463] sm:$0x1]
    %465 = vst [vmem:[#allocation2 + $0x30] sm:$0x1] %v464
    %s466 = sld [smem:[#allocation3 + $0x31]]
    %p467 = scmp.gt.s32.totalorder %s466, 0
    %s468 = scalar_select %p467, %s466, 0
    %p469 = scmp.lt.s32.totalorder %s468, 49
    %s470 = scalar_select %p469, %s468, 49
    %s471 = scalar_lea.vmem [#allocation7], %s470
    %v472 = vld [vmem:[%s471] sm:$0x1]
    %473 = vst [vmem:[#allocation2 + $0x31] sm:$0x1] %v472
    %s474 = sld [smem:[#allocation3 + $0x32]]
    %p475 = scmp.gt.s32.totalorder %s474, 0
    %s476 = scalar_select %p475, %s474, 0
    %p477 = scmp.lt.s32.totalorder %s476, 49
    %s478 = scalar_select %p477, %s476, 49
    %s479 = scalar_lea.vmem [#allocation7], %s478
    %v480 = vld [vmem:[%s479] sm:$0x1]
    %481 = vst [vmem:[#allocation2 + $0x32] sm:$0x1] %v480
    %s482 = sld [smem:[#allocation3 + $0x33]]
    %p483 = scmp.gt.s32.totalorder %s482, 0
    %s484 = scalar_select %p483, %s482, 0
    %p485 = scmp.lt.s32.totalorder %s484, 49
    %s486 = scalar_select %p485, %s484, 49
    %s487 = scalar_lea.vmem [#allocation7], %s486
    %v488 = vld [vmem:[%s487] sm:$0x1]
    %489 = vst [vmem:[#allocation2 + $0x33] sm:$0x1] %v488
    %s490 = sld [smem:[#allocation3 + $0x34]]
    %p491 = scmp.gt.s32.totalorder %s490, 0
    %s492 = scalar_select %p491, %s490, 0
    %p493 = scmp.lt.s32.totalorder %s492, 49
    %s494 = scalar_select %p493, %s492, 49
    %s495 = scalar_lea.vmem [#allocation7], %s494
    %v496 = vld [vmem:[%s495] sm:$0x1]
    %497 = vst [vmem:[#allocation2 + $0x34] sm:$0x1] %v496
    %s498 = sld [smem:[#allocation3 + $0x35]]
    %p499 = scmp.gt.s32.totalorder %s498, 0
    %s500 = scalar_select %p499, %s498, 0
    %p501 = scmp.lt.s32.totalorder %s500, 49
    %s502 = scalar_select %p501, %s500, 49
    %s503 = scalar_lea.vmem [#allocation7], %s502
    %v504 = vld [vmem:[%s503] sm:$0x1]
    %505 = vst [vmem:[#allocation2 + $0x35] sm:$0x1] %v504
    %s506 = sld [smem:[#allocation3 + $0x36]]
    %p507 = scmp.gt.s32.totalorder %s506, 0
    %s508 = scalar_select %p507, %s506, 0
    %p509 = scmp.lt.s32.totalorder %s508, 49
    %s510 = scalar_select %p509, %s508, 49
    %s511 = scalar_lea.vmem [#allocation7], %s510
    %v512 = vld [vmem:[%s511] sm:$0x1]
    %513 = vst [vmem:[#allocation2 + $0x36] sm:$0x1] %v512
    %s514 = sld [smem:[#allocation3 + $0x37]]
    %p515 = scmp.gt.s32.totalorder %s514, 0
    %s516 = scalar_select %p515, %s514, 0
    %p517 = scmp.lt.s32.totalorder %s516, 49
    %s518 = scalar_select %p517, %s516, 49
    %s519 = scalar_lea.vmem [#allocation7], %s518
    %v520 = vld [vmem:[%s519] sm:$0x1]
    %521 = vst [vmem:[#allocation2 + $0x37] sm:$0x1] %v520
    %v522 = vld [vmem:[#allocation2] sm:$0xff]
    %v523 = vld [vmem:[#allocation2 + $0x8] sm:$0xff]
    %v524 = vld [vmem:[#allocation2 + $0x10] sm:$0xff]
    %v525 = vld [vmem:[#allocation2 + $0x18] sm:$0xff]
    %v526 = vld [vmem:[#allocation2 + $0x20] sm:$0xff]
    %v527 = vld [vmem:[#allocation2 + $0x28] sm:$0xff]
    %v528 = vld [vmem:[#allocation2 + $0x30] sm:$0xff]
    %v529 = vld [vmem:[%s4] sm:$0x1]
    %v530 = vld [vmem:[%s4 + $0x1] sm:$0x1]
    %v531 = vpack.c.bf16 %v523, %v522
    %v532 = vpack.c.bf16 %v525, %v524
    %v533 = vpack.c.bf16 %v527, %v526
    %v534 = vpack.c.bf16 %v528, %v528
    %v535 = vld [vmem:[#allocation8] sm:$0xf]
    %v536 = vld [vmem:[#allocation8 + $0x4] sm:$0xf]
    %v537 = vld [vmem:[#allocation8 + $0x8] sm:$0xf]
    %v538 = vld [vmem:[#allocation8 + $0xc] sm:$0xf]
    %v539 = vld [vmem:[#allocation8 + $0x10] sm:$0xf]
    %v540 = vld [vmem:[#allocation8 + $0x14] sm:$0xf]
    %v541 = vld [vmem:[#allocation8 + $0x18] sm:$0xf]
    %v542 = vld [vmem:[#allocation8 + $0x1c] sm:$0xf]
    %v543 = vld [vmem:[#allocation8 + $0x20] sm:$0xf]
    %v544 = vld [vmem:[#allocation8 + $0x24] sm:$0xf]
    %v545 = vld [vmem:[#allocation8 + $0x28] sm:$0xf]
    %v546 = vld [vmem:[#allocation8 + $0x2c] sm:$0xf]
    %v547 = vld [vmem:[#allocation8 + $0x30] sm:$0xf]
    %v548 = vld [vmem:[#allocation8 + $0x34] sm:$0xf]
    %v549 = vld [vmem:[#allocation8 + $0x38] sm:$0xf]
    %v550 = vld [vmem:[#allocation8 + $0x3c] sm:$0xf]
    %v551 = vlaneseq
    %v552 = vshrl.u32 %v551, 7
    %v553 = vsub.s32 0, %v552
    %v554 = vrot.slane %v529, %v553
    %v571 = vunpack.c.l.b16 %v535
    %v572 = vunpack.c.l.b16 %v536
    %v573 = vunpack.c.l.b16 %v537
    %v574 = vunpack.c.l.b16 %v538
    %v575 = vunpack.c.l.b16 %v539
    %v576 = vunpack.c.l.b16 %v540
    %v577 = vunpack.c.l.b16 %v541
    %v578 = vunpack.c.l.b16 %v542
    %v579 = vunpack.c.l.b16 %v543
    %v580 = vunpack.c.l.b16 %v544
    %v581 = vunpack.c.l.b16 %v545
    %v582 = vunpack.c.l.b16 %v546
    %v583 = vunpack.c.l.b16 %v547
    %v584 = vunpack.c.l.b16 %v548
    %v585 = vunpack.c.l.b16 %v549
    %v586 = vunpack.c.l.b16 %v550
    %v587 = vpack.c.b16 %v572, %v571
    %v588 = vpack.c.b16 %v574, %v573
    %v589 = vpack.c.b16 %v576, %v575
    %v590 = vpack.c.b16 %v578, %v577
    %v591 = vpack.c.b16 %v580, %v579
    %v592 = vpack.c.b16 %v582, %v581
    %v593 = vpack.c.b16 %v584, %v583
    %v594 = vpack.c.b16 %v586, %v585
    %603 = vmatprep.subr.bf16.mxu0 0
    %604 = vmatpush1.bf16.msra.mxu0 %v587
    %605 = vmatprep.subr.bf16.mxu0 0
    %606 = vmatpush1.bf16.msra.mxu0 %v588
    %607 = vmatprep.subr.bf16.mxu0 0
    %608 = vmatpush1.bf16.msra.mxu0 %v589
    %609 = vmatprep.subr.bf16.mxu0 0
    %610 = vmatpush1.bf16.msra.mxu0 %v590
    %611 = vmatprep.subr.bf16.mxu0 0
    %612 = vmatpush1.bf16.msra.mxu0 %v591
    %613 = vmatprep.subr.bf16.mxu0 0
    %614 = vmatpush1.bf16.msra.mxu0 %v592
    %615 = vmatprep.subr.bf16.mxu0 0
    %616 = vmatpush1.bf16.msra.mxu0 %v593
    %617 = vmatprep.subr.bf16.mxu0 0
    %618 = vmatpush1.bf16.msra.mxu0 %v594
    %619 = vmatprep.subr.bf16.mxu0 0
    %620 = vmatpush1.bf16.msra.mxu0 0
    %621 = vmatprep.subr.bf16.mxu0 0
    %622 = vmatpush1.bf16.msra.mxu0 0
    %623 = vmatprep.subr.bf16.mxu0 0
    %624 = vmatpush1.bf16.msra.mxu0 0
    %625 = vmatprep.subr.bf16.mxu0 0
    %626 = vmatpush1.bf16.msra.mxu0 0
    %627 = vmatprep.subr.bf16.mxu0 0
    %628 = vmatpush1.bf16.msra.mxu0 0
    %629 = vmatprep.subr.bf16.mxu0 0
    %630 = vmatpush1.bf16.msra.mxu0 0
    %631 = vmatprep.subr.bf16.mxu0 0
    %632 = vmatpush1.bf16.msra.mxu0 0
    %633 = vmatprep.subr.bf16.mxu0 0
    %634 = vmatpush1.bf16.msra.mxu0 0
    %635 = vmatprep.mubr.bf16.mxu0 0
    %636 = vmatmul.mubr.bf16.gmra.mrb[0].mxu0 %v531
    %v637 = vpop.f32.mrb[0].mxu0
    %v638 = vadd.f32 %v554, %v637
    %v639 = vpop.f32.mrb[0].mxu0
    %v640 = vpop.f32.mrb[0].mxu0
    %v641 = vadd.f32 %v554, %v640
    %v642 = vpop.f32.mrb[0].mxu0
    %643 = vmatprep.mubr.bf16.mxu0 0
    %644 = vmatmul.mubr.bf16.gmra.mrb[0].mxu0 %v532
    %v645 = vpop.f32.mrb[0].mxu0
    %v646 = vadd.f32 %v554, %v645
    %v647 = vpop.f32.mrb[0].mxu0
    %v648 = vpop.f32.mrb[0].mxu0
    %v649 = vadd.f32 %v554, %v648
    %v650 = vpop.f32.mrb[0].mxu0
    %651 = vmatprep.mubr.bf16.mxu0 0
    %652 = vmatmul.mubr.bf16.gmra.mrb[0].mxu0 %v533
    %v653 = vpop.f32.mrb[0].mxu0
    %v654 = vadd.f32 %v554, %v653
    %v655 = vpop.f32.mrb[0].mxu0
    %v656 = vpop.f32.mrb[0].mxu0
    %v657 = vadd.f32 %v554, %v656
    %v658 = vpop.f32.mrb[0].mxu0
    %659 = vmatprep.mubr.bf16.mxu0 0
    %660 = vmatmul.mubr.bf16.gmra.mrb[0].mxu0 %v534
    %v661 = vpop.f32.mrb[0].mxu0
    %v662 = vadd.f32 %v554, %v661
    %v663 = vpop.f32.mrb[0].mxu0
    %v664 = vpop.f32.mrb[0].mxu0
    %v665 = vpop.f32.mrb[0].mxu0
    %666 = vdwg.mxu0
    %v667 = vxor.u32 %v638, 2147483648
    %v668 = vxor.u32 %v641, 2147483648
    %v669 = vxor.u32 %v646, 2147483648
    %v670 = vxor.u32 %v649, 2147483648
    %v671 = vxor.u32 %v654, 2147483648
    %v672 = vxor.u32 %v657, 2147483648
    %v673 = vxor.u32 %v662, 2147483648
    %v674 = vmul.f32 %v667, 1.442695
    %v675 = vpow.pop %v674
    %v676 = vmul.f32 %v668, 1.442695
    %v677 = vpow.pop %v676
    %v678 = vmul.f32 %v669, 1.442695
    %v679 = vpow.pop %v678
    %v680 = vmul.f32 %v670, 1.442695
    %v681 = vpow.pop %v680
    %v682 = vmul.f32 %v671, 1.442695
    %v683 = vpow.pop %v682
    %v684 = vmul.f32 %v672, 1.442695
    %v685 = vpow.pop %v684
    %v686 = vmul.f32 %v673, 1.442695
    %v687 = vpow.pop %v686
    %v688 = vadd.f32 %v675, 1.0
    %v689 = vadd.f32 %v677, 1.0
    %v690 = vadd.f32 %v679, 1.0
    %v691 = vadd.f32 %v681, 1.0
    %v692 = vadd.f32 %v683, 1.0
    %v693 = vadd.f32 %v685, 1.0
    %v694 = vadd.f32 %v687, 1.0
    %v695 = vrcp.pop %v688
    %v696 = vmul.f32 1.0, %v695
    %v697 = vrcp.pop %v689
    %v698 = vmul.f32 1.0, %v697
    %v699 = vrcp.pop %v690
    %v700 = vmul.f32 1.0, %v699
    %v701 = vrcp.pop %v691
    %v702 = vmul.f32 1.0, %v701
    %v703 = vrcp.pop %v692
    %v704 = vmul.f32 1.0, %v703
    %v705 = vrcp.pop %v693
    %v706 = vmul.f32 1.0, %v705
    %v707 = vrcp.pop %v694
    %v708 = vmul.f32 1.0, %v707
    %v709 = vmul.f32 %v638, %v696
    %v710 = vmul.f32 %v641, %v698
    %v711 = vmul.f32 %v646, %v700
    %v712 = vmul.f32 %v649, %v702
    %v713 = vmul.f32 %v654, %v704
    %v714 = vmul.f32 %v657, %v706
    %v715 = vmul.f32 %v662, %v708
    %v716 = vpack.c.bf16 %v710, %v709
    %v717 = vpack.c.bf16 %v712, %v711
    %v718 = vpack.c.bf16 %v714, %v713
    %v719 = vpack.c.bf16 %v715, %v715
    %v720 = vld [vmem:[#allocation10] sm:$0xf]
    %v721 = vld [vmem:[#allocation10 + $0x4] sm:$0xf]
    %v722 = vld [vmem:[#allocation10 + $0x8] sm:$0xf]
    %v723 = vld [vmem:[#allocation10 + $0xc] sm:$0xf]
    %v724 = vld [vmem:[#allocation10 + $0x10] sm:$0xf]
    %v725 = vld [vmem:[#allocation10 + $0x14] sm:$0xf]
    %v726 = vld [vmem:[#allocation10 + $0x18] sm:$0xf]
    %v727 = vld [vmem:[#allocation10 + $0x1c] sm:$0xf]
    %v728 = vld [vmem:[#allocation10 + $0x20] sm:$0xf]
    %v729 = vld [vmem:[#allocation10 + $0x24] sm:$0xf]
    %v730 = vld [vmem:[#allocation10 + $0x28] sm:$0xf]
    %v731 = vld [vmem:[#allocation10 + $0x2c] sm:$0xf]
    %v732 = vld [vmem:[#allocation10 + $0x30] sm:$0xf]
    %v733 = vld [vmem:[#allocation10 + $0x34] sm:$0xf]
    %v734 = vld [vmem:[#allocation10 + $0x38] sm:$0xf]
    %v735 = vld [vmem:[#allocation10 + $0x3c] sm:$0xf]
    %v736 = vlaneseq
    %v737 = vshrl.u32 %v736, 7
    %v738 = vsub.s32 0, %v737
    %v739 = vrot.slane %v530, %v738
    %v756 = vunpack.c.l.b16 %v720
    %v757 = vunpack.c.l.b16 %v721
    %v758 = vunpack.c.l.b16 %v722
    %v759 = vunpack.c.l.b16 %v723
    %v760 = vunpack.c.l.b16 %v724
    %v761 = vunpack.c.l.b16 %v725
    %v762 = vunpack.c.l.b16 %v726
    %v763 = vunpack.c.l.b16 %v727
    %v764 = vunpack.c.l.b16 %v728
    %v765 = vunpack.c.l.b16 %v729
    %v766 = vunpack.c.l.b16 %v730
    %v767 = vunpack.c.l.b16 %v731
    %v768 = vunpack.c.l.b16 %v732
    %v769 = vunpack.c.l.b16 %v733
    %v770 = vunpack.c.l.b16 %v734
    %v771 = vunpack.c.l.b16 %v735
    %v772 = vpack.c.b16 %v757, %v756
    %v773 = vpack.c.b16 %v759, %v758
    %v774 = vpack.c.b16 %v761, %v760
    %v775 = vpack.c.b16 %v763, %v762
    %v776 = vpack.c.b16 %v765, %v764
    %v777 = vpack.c.b16 %v767, %v766
    %v778 = vpack.c.b16 %v769, %v768
    %v779 = vpack.c.b16 %v771, %v770
    %788 = vmatprep.subr.bf16.mxu0 0
    %789 = vmatpush1.bf16.msra.mxu0 %v772
    %790 = vmatprep.subr.bf16.mxu0 0
    %791 = vmatpush1.bf16.msra.mxu0 %v773
    %792 = vmatprep.subr.bf16.mxu0 0
    %793 = vmatpush1.bf16.msra.mxu0 %v774
    %794 = vmatprep.subr.bf16.mxu0 0
    %795 = vmatpush1.bf16.msra.mxu0 %v775
    %796 = vmatprep.subr.bf16.mxu0 0
    %797 = vmatpush1.bf16.msra.mxu0 %v776
    %798 = vmatprep.subr.bf16.mxu0 0
    %799 = vmatpush1.bf16.msra.mxu0 %v777
    %800 = vmatprep.subr.bf16.mxu0 0
    %801 = vmatpush1.bf16.msra.mxu0 %v778
    %802 = vmatprep.subr.bf16.mxu0 0
    %803 = vmatpush1.bf16.msra.mxu0 %v779
    %804 = vmatprep.subr.bf16.mxu0 0
    %805 = vmatpush1.bf16.msra.mxu0 0
    %806 = vmatprep.subr.bf16.mxu0 0
    %807 = vmatpush1.bf16.msra.mxu0 0
    %808 = vmatprep.subr.bf16.mxu0 0
    %809 = vmatpush1.bf16.msra.mxu0 0
    %810 = vmatprep.subr.bf16.mxu0 0
    %811 = vmatpush1.bf16.msra.mxu0 0
    %812 = vmatprep.subr.bf16.mxu0 0
    %813 = vmatpush1.bf16.msra.mxu0 0
    %814 = vmatprep.subr.bf16.mxu0 0
    %815 = vmatpush1.bf16.msra.mxu0 0
    %816 = vmatprep.subr.bf16.mxu0 0
    %817 = vmatpush1.bf16.msra.mxu0 0
    %818 = vmatprep.subr.bf16.mxu0 0
    %819 = vmatpush1.bf16.msra.mxu0 0
    %820 = vmatprep.mubr.bf16.mxu0 0
    %821 = vmatmul.mubr.bf16.gmra.mrb[0].mxu0 %v716
    %v822 = vpop.f32.mrb[0].mxu0
    %v823 = vadd.f32 %v739, %v822
    %v824 = vpop.f32.mrb[0].mxu0
    %v825 = vpop.f32.mrb[0].mxu0
    %v826 = vadd.f32 %v739, %v825
    %v827 = vpop.f32.mrb[0].mxu0
    %828 = vmatprep.mubr.bf16.mxu0 0
    %829 = vmatmul.mubr.bf16.gmra.mrb[0].mxu0 %v717
    %v830 = vpop.f32.mrb[0].mxu0
    %v831 = vadd.f32 %v739, %v830
    %v832 = vpop.f32.mrb[0].mxu0
    %v833 = vpop.f32.mrb[0].mxu0
    %v834 = vadd.f32 %v739, %v833
    %v835 = vpop.f32.mrb[0].mxu0
    %836 = vmatprep.mubr.bf16.mxu0 0
    %837 = vmatmul.mubr.bf16.gmra.mrb[0].mxu0 %v718
    %v838 = vpop.f32.mrb[0].mxu0
    %v839 = vadd.f32 %v739, %v838
    %v840 = vpop.f32.mrb[0].mxu0
    %v841 = vpop.f32.mrb[0].mxu0
    %v842 = vadd.f32 %v739, %v841
    %v843 = vpop.f32.mrb[0].mxu0
    %844 = vmatprep.mubr.bf16.mxu0 0
    %845 = vmatmul.mubr.bf16.gmra.mrb[0].mxu0 %v719
    %v846 = vpop.f32.mrb[0].mxu0
    %v847 = vadd.f32 %v739, %v846
    %v848 = vpop.f32.mrb[0].mxu0
    %v849 = vpop.f32.mrb[0].mxu0
    %v850 = vpop.f32.mrb[0].mxu0
    %851 = vdwg.mxu0
    %v852 = vxor.u32 %v823, 2147483648
    %v853 = vxor.u32 %v826, 2147483648
    %v854 = vxor.u32 %v831, 2147483648
    %v855 = vxor.u32 %v834, 2147483648
    %v856 = vxor.u32 %v839, 2147483648
    %v857 = vxor.u32 %v842, 2147483648
    %v858 = vxor.u32 %v847, 2147483648
    %v859 = vmul.f32 %v852, 1.442695
    %v860 = vpow.pop %v859
    %v861 = vmul.f32 %v853, 1.442695
    %v862 = vpow.pop %v861
    %v863 = vmul.f32 %v854, 1.442695
    %v864 = vpow.pop %v863
    %v865 = vmul.f32 %v855, 1.442695
    %v866 = vpow.pop %v865
    %v867 = vmul.f32 %v856, 1.442695
    %v868 = vpow.pop %v867
    %v869 = vmul.f32 %v857, 1.442695
    %v870 = vpow.pop %v869
    %v871 = vmul.f32 %v858, 1.442695
    %v872 = vpow.pop %v871
    %v873 = vadd.f32 %v860, 1.0
    %v874 = vadd.f32 %v862, 1.0
    %v875 = vadd.f32 %v864, 1.0
    %v876 = vadd.f32 %v866, 1.0
    %v877 = vadd.f32 %v868, 1.0
    %v878 = vadd.f32 %v870, 1.0
    %v879 = vadd.f32 %v872, 1.0
    %v880 = vrcp.pop %v873
    %v881 = vmul.f32 1.0, %v880
    %v882 = vrcp.pop %v874
    %v883 = vmul.f32 1.0, %v882
    %v884 = vrcp.pop %v875
    %v885 = vmul.f32 1.0, %v884
    %v886 = vrcp.pop %v876
    %v887 = vmul.f32 1.0, %v886
    %v888 = vrcp.pop %v877
    %v889 = vmul.f32 1.0, %v888
    %v890 = vrcp.pop %v878
    %v891 = vmul.f32 1.0, %v890
    %v892 = vrcp.pop %v879
    %v893 = vmul.f32 1.0, %v892
    %v894 = vmul.f32 %v823, %v881
    %v895 = vmul.f32 %v826, %v883
    %v896 = vmul.f32 %v831, %v885
    %v897 = vmul.f32 %v834, %v887
    %v898 = vmul.f32 %v839, %v889
    %v899 = vmul.f32 %v842, %v891
    %v900 = vmul.f32 %v847, %v893
    %901 = vst [vmem:[#allocation11] sm:$0xff] %v894
    %902 = vst [vmem:[#allocation11 + $0x8] sm:$0xff] %v895
    %903 = vst [vmem:[#allocation11 + $0x10] sm:$0xff] %v896
    %904 = vst [vmem:[#allocation11 + $0x18] sm:$0xff] %v897
    %905 = vst [vmem:[#allocation11 + $0x20] sm:$0xff] %v898
    %906 = vst [vmem:[#allocation11 + $0x28] sm:$0xff] %v899
    %907 = vst [vmem:[#allocation11 + $0x30] sm:$0xff] %v900
    // Predicated region
    $region38: #{tpu_custom_call.1} parent=1 // pred_check
      _
    $region39: #{tpu_custom_call.1} parent=1 // pred_check_branch
      %909 = sbr.rel (0) target = $region41
    $region40: #{tpu_custom_call.1} parent=1 // pred_region
      %s911 = ssub.s32 896, 896
      %912 = vsyncadd [#allocation5], %s911
      %s913 = sshll.u32 [#allocation11], 4
      %s914 = int_to_ptr.vmem [resolvable:$true] %s913
      %919 = dma.vmem_to_hbm [thread:$0]  %s914, 896, %s5, [#allocation5], 128, 128, 8
    $region41: #{tpu_custom_call.1} parent=1 // pred_fallthru
      _
    // Predicated region
    $region42: #{tpu_custom_call.1} parent=1 // pred_check
      _
    $region43: #{tpu_custom_call.1} parent=1 // pred_check_branch
      %921 = sbr.rel (0) target = $region45
    $region44: #{tpu_custom_call.1} parent=1 // pred_region
      %922 = dma.done [#allocation5], 896
    $region45: #{tpu_custom_call.1} parent=1 // pred_fallthru
      _
    %923 = vsyncpa [#allocation4], 1
    %924 = vsyncpa [#allocation9], 1
    %925 = vsyncpa [#allocation5], 1
    %926 = vsyncpa [#allocation6], 1

</llo_original>
